<compile_context>
chip_gen: v6e
topology: v6e:2x2x1
jax: 0.10.0
libtpu: 0.0.40
codegen_flags: <defaults>
</compile_context>

<pallas_src>
import jax
import jax.numpy as jnp
from jax import lax
from jax.experimental import pallas as pl
from jax.experimental.pallas import tpu as pltpu

_QUERY_CHUNK = 128  # query rows processed per inner-loop step


def _attn_kernel(mask_ref, s_ref, v_ref, o_ref):
    # s_ref:    (G, S, S) f32  pre-softmax scores for G heads
    # mask_ref: (1, S)    f32  additive mask, broadcast over query rows
    # v_ref:    (G, S, D) f32  values for the same G heads
    # o_ref:    (G, S, D) f32  output
    G, S, _ = s_ref.shape
    tq = _QUERY_CHUNK if S % _QUERY_CHUNK == 0 else S
    n_chunks = S // tq

    mask = mask_ref[...]                                     # (1, S)
    # Hoist the bf16 cast of the (resident) value tiles out of the chunk loop.
    v_bf16 = [v_ref[g].astype(jnp.bfloat16) for g in range(G)]

    def chunk_body(c, carry):
        row0 = pl.multiple_of(c * tq, tq)
        for g in range(G):                                   # static, G small
            s = s_ref[g, pl.ds(row0, tq), :] + mask          # (tq, S)
            m = jnp.max(s, axis=-1, keepdims=True)
            e = jnp.exp(s - m)                               # unnormalized probs
            denom = jnp.sum(e, axis=-1, keepdims=True)
            # TODO(synk): Dropout(p=0.1) implemented as identity (eval-mode);
            # training-mode stochastic masking + 1/0.9 rescale omitted.
            acc = jnp.dot(e.astype(jnp.bfloat16), v_bf16[g],
                          preferred_element_type=jnp.float32)    # (tq, D) f32
            o_ref[g, pl.ds(row0, tq), :] = (
                acc * pl.reciprocal(denom, approx=True)
            ).astype(o_ref.dtype)
        return carry

    lax.fori_loop(0, n_chunks, chunk_body, 0, unroll=True)


def add_softmax_dropout_matmul(scores, mask, values, *, heads_per_step=2):
    """scores: [B,H,S,S] f32, mask: [1,1,1,S] f32, values: [B,H,S,D] f32."""
    B, H, S, S2 = scores.shape
    assert S == S2
    D = values.shape[-1]
    BH = B * H

    G = max(1, min(heads_per_step, BH))
    while BH % G:
        G -= 1

    scores_f = scores.reshape(BH, S, S)
    values_f = values.reshape(BH, S, D)
    mask_f = mask.reshape(1, S)

    out = pl.pallas_call(
        _attn_kernel,
        out_shape=jax.ShapeDtypeStruct((BH, S, D), scores.dtype),
        grid_spec=pltpu.PrefetchScalarGridSpec(
            num_scalar_prefetch=0,
            grid=(BH // G,),
            in_specs=[
                pl.BlockSpec((1, S), lambda i: (0, 0)),        # shared mask
                pl.BlockSpec((G, S, S), lambda i: (i, 0, 0)),  # G heads of scores
                pl.BlockSpec((G, S, D), lambda i: (i, 0, 0)),  # G heads of values
            ],
            out_specs=pl.BlockSpec((G, S, D), lambda i: (i, 0, 0)),
        ),
        compiler_params=pltpu.CompilerParams(
            dimension_semantics=("parallel",),
        ),
    )(mask_f, scores_f, values_f)

    return out.reshape(B, H, S, D)


def _reference(scores, mask, values):
    s = scores + mask
    p = jax.nn.softmax(s, axis=-1)
    return jnp.einsum("bhqk,bhkd->bhqd", p, values)


if __name__ == "__main__":
    # Small shapes consistent with the module's [1, 12, 384, 384] / [1, 12, 384, 64].
    # S=256 exercises the in-kernel query chunking, H=4 exercises G=2 head merging.
    B, H, S, D = 1, 4, 256, 64

    key = jax.random.PRNGKey(0)
    k1, k2, k3 = jax.random.split(key, 3)
    x385 = jax.random.normal(k1, (B, H, S, S), dtype=jnp.float32)   # attention scores
    x377 = jax.random.normal(k2, (B, H, S, D), dtype=jnp.float32)   # values
    # deterministic stand-in for self._tensor_constant20 (uniform [0,1))
    mask = jax.random.uniform(k3, (1, 1, 1, S), dtype=jnp.float32)

    out = add_softmax_dropout_matmul(x385, mask, x377)
    out = jax.block_until_ready(out)

    ref = _reference(x385, mask, x377)
    assert out.shape == (B, H, S, D)
    # bf16 MXU inputs + approximate reciprocal -> looser tolerance than pure f32
    assert jnp.allclose(out, ref, atol=2e-2, rtol=2e-2), "mismatch vs reference"

    print("KERNEL_OK")
</pallas_src>

<mosaic_0001>
module attributes {stable_mosaic.version = 11 : i64} {
  func.func @_attn_kernel(%arg0: i32, %arg1: memref<1x256xf32, #tpu.memory_space<vmem>>, %arg2: memref<2x256x256xf32, #tpu.memory_space<vmem>>, %arg3: memref<2x256x64xf32, #tpu.memory_space<vmem>>, %arg4: memref<2x256x64xf32, #tpu.memory_space<vmem>>) attributes {dimension_semantics = [#tpu.dimension_semantics<parallel>], iteration_bounds = array<i64: 2>, scalar_prefetch = 0 : i64, scratch_operands = 0 : i64, tpu.core_type = #tpu.core_type<tc>, window_params = [{pipeline_mode = #tpu.pipeline_mode<synchronous>, transform_indices = @transform_0, window_bounds = array<i64: 1, 256>}, {transform_indices = @transform_1, window_bounds = array<i64: 2, 256, 256>}, {transform_indices = @transform_2, window_bounds = array<i64: 2, 256, 64>}, {transform_indices = @transform_3, window_bounds = array<i64: 2, 256, 64>}]} {
    %c0 = arith.constant 0 : index
    %c0_0 = arith.constant 0 : index
    %0 = vector.load %arg1[%c0, %c0_0] : memref<1x256xf32, #tpu.memory_space<vmem>>, vector<1x256xf32>
    %c0_1 = arith.constant 0 : index
    %c0_2 = arith.constant 0 : index
    %c0_3 = arith.constant 0 : index
    %1 = vector.load %arg3[%c0_1, %c0_2, %c0_3] : memref<2x256x64xf32, #tpu.memory_space<vmem>>, vector<1x256x64xf32>
    %2 = vector.shape_cast %1 : vector<1x256x64xf32> to vector<256x64xf32>
    %3 = arith.truncf %2 : vector<256x64xf32> to vector<256x64xbf16>
    %c1 = arith.constant 1 : index
    %c0_4 = arith.constant 0 : index
    %c0_5 = arith.constant 0 : index
    %4 = vector.load %arg3[%c1, %c0_4, %c0_5] : memref<2x256x64xf32, #tpu.memory_space<vmem>>, vector<1x256x64xf32>
    %5 = vector.shape_cast %4 : vector<1x256x64xf32> to vector<256x64xf32>
    %6 = arith.truncf %5 : vector<256x64xf32> to vector<256x64xbf16>
    %c0_i32 = arith.constant 0 : i32
    %c128_i32 = arith.constant 128 : i32
    %7 = arith.muli %c0_i32, %c128_i32 : i32
    %8 = tpu.assume_multiple %7, 128 : i32
    %c0_6 = arith.constant 0 : index
    %9 = arith.index_cast %8 : i32 to index
    %c0_7 = arith.constant 0 : index
    %10 = vector.load %arg2[%c0_6, %9, %c0_7] : memref<2x256x256xf32, #tpu.memory_space<vmem>>, vector<1x128x256xf32>
    %11 = vector.shape_cast %10 : vector<1x128x256xf32> to vector<128x256xf32>
    %12 = vector.broadcast %0 : vector<1x256xf32> to vector<128x256xf32>
    %13 = arith.addf %11, %12 : vector<128x256xf32>
    %cst = arith.constant dense<0xFF800000> : vector<128xf32>
    %14 = vector.multi_reduction <maximumf>, %13, %cst [1] : vector<128x256xf32> to vector<128xf32>
    %15 = vector.shape_cast %14 : vector<128xf32> to vector<128x1xf32>
    %16 = vector.broadcast %15 : vector<128x1xf32> to vector<128x256xf32>
    %17 = arith.subf %13, %16 : vector<128x256xf32>
    %18 = math.exp %17 : vector<128x256xf32>
    %cst_8 = arith.constant dense<0.000000e+00> : vector<128xf32>
    %19 = vector.multi_reduction <add>, %18, %cst_8 [1] : vector<128x256xf32> to vector<128xf32>
    %20 = vector.shape_cast %19 : vector<128xf32> to vector<128x1xf32>
    %21 = arith.truncf %18 : vector<128x256xf32> to vector<128x256xbf16>
    %cst_9 = arith.constant dense<0.000000e+00> : vector<128x64xf32>
    %22 = tpu.matmul %21, %3, %cst_9 {dimension_numbers = #tpu.dot_dimension_numbers<[1], [0], [0], [1], [0, 0, 1, 1], [], []>} : vector<128x256xbf16>, vector<256x64xbf16>, vector<128x64xf32> -> vector<128x64xf32>
    %23 = tpu.reciprocal %20 {approx = true} : vector<128x1xf32> -> vector<128x1xf32>
    %24 = vector.broadcast %23 : vector<128x1xf32> to vector<128x64xf32>
    %25 = arith.mulf %22, %24 : vector<128x64xf32>
    %c0_10 = arith.constant 0 : index
    %26 = arith.index_cast %8 : i32 to index
    %c0_11 = arith.constant 0 : index
    %27 = vector.load %arg4[%c0_10, %26, %c0_11] : memref<2x256x64xf32, #tpu.memory_space<vmem>>, vector<1x128x64xf32>
    %28 = vector.shape_cast %27 : vector<1x128x64xf32> to vector<128x64xf32>
    %29 = vector.shape_cast %25 : vector<128x64xf32> to vector<1x128x64xf32>
    tpu.vector_store %arg4[%c0_10, %26, %c0_11], %29 {strides = array<i32>} : memref<2x256x64xf32, #tpu.memory_space<vmem>>, vector<1x128x64xf32>,
    %c1_12 = arith.constant 1 : index
    %30 = arith.index_cast %8 : i32 to index
    %c0_13 = arith.constant 0 : index
    %31 = vector.load %arg2[%c1_12, %30, %c0_13] : memref<2x256x256xf32, #tpu.memory_space<vmem>>, vector<1x128x256xf32>
    %32 = vector.shape_cast %31 : vector<1x128x256xf32> to vector<128x256xf32>
    %33 = vector.broadcast %0 : vector<1x256xf32> to vector<128x256xf32>
    %34 = arith.addf %32, %33 : vector<128x256xf32>
    %cst_14 = arith.constant dense<0xFF800000> : vector<128xf32>
    %35 = vector.multi_reduction <maximumf>, %34, %cst_14 [1] : vector<128x256xf32> to vector<128xf32>
    %36 = vector.shape_cast %35 : vector<128xf32> to vector<128x1xf32>
    %37 = vector.broadcast %36 : vector<128x1xf32> to vector<128x256xf32>
    %38 = arith.subf %34, %37 : vector<128x256xf32>
    %39 = math.exp %38 : vector<128x256xf32>
    %cst_15 = arith.constant dense<0.000000e+00> : vector<128xf32>
    %40 = vector.multi_reduction <add>, %39, %cst_15 [1] : vector<128x256xf32> to vector<128xf32>
    %41 = vector.shape_cast %40 : vector<128xf32> to vector<128x1xf32>
    %42 = arith.truncf %39 : vector<128x256xf32> to vector<128x256xbf16>
    %cst_16 = arith.constant dense<0.000000e+00> : vector<128x64xf32>
    %43 = tpu.matmul %42, %6, %cst_16 {dimension_numbers = #tpu.dot_dimension_numbers<[1], [0], [0], [1], [0, 0, 1, 1], [], []>} : vector<128x256xbf16>, vector<256x64xbf16>, vector<128x64xf32> -> vector<128x64xf32>
    %44 = tpu.reciprocal %41 {approx = true} : vector<128x1xf32> -> vector<128x1xf32>
    %45 = vector.broadcast %44 : vector<128x1xf32> to vector<128x64xf32>
    %46 = arith.mulf %43, %45 : vector<128x64xf32>
    %c1_17 = arith.constant 1 : index
    %47 = arith.index_cast %8 : i32 to index
    %c0_18 = arith.constant 0 : index
    %48 = vector.load %arg4[%c1_17, %47, %c0_18] : memref<2x256x64xf32, #tpu.memory_space<vmem>>, vector<1x128x64xf32>
    %49 = vector.shape_cast %48 : vector<1x128x64xf32> to vector<128x64xf32>
    %50 = vector.shape_cast %46 : vector<128x64xf32> to vector<1x128x64xf32>
    tpu.vector_store %arg4[%c1_17, %47, %c0_18], %50 {strides = array<i32>} : memref<2x256x64xf32, #tpu.memory_space<vmem>>, vector<1x128x64xf32>,
    %c1_i32 = arith.constant 1 : i32
    %c128_i32_19 = arith.constant 128 : i32
    %51 = arith.muli %c1_i32, %c128_i32_19 : i32
    %52 = tpu.assume_multiple %51, 128 : i32
    %c0_20 = arith.constant 0 : index
    %53 = arith.index_cast %52 : i32 to index
    %c0_21 = arith.constant 0 : index
    %54 = vector.load %arg2[%c0_20, %53, %c0_21] : memref<2x256x256xf32, #tpu.memory_space<vmem>>, vector<1x128x256xf32>
    %55 = vector.shape_cast %54 : vector<1x128x256xf32> to vector<128x256xf32>
    %56 = vector.broadcast %0 : vector<1x256xf32> to vector<128x256xf32>
    %57 = arith.addf %55, %56 : vector<128x256xf32>
    %cst_22 = arith.constant dense<0xFF800000> : vector<128xf32>
    %58 = vector.multi_reduction <maximumf>, %57, %cst_22 [1] : vector<128x256xf32> to vector<128xf32>
    %59 = vector.shape_cast %58 : vector<128xf32> to vector<128x1xf32>
    %60 = vector.broadcast %59 : vector<128x1xf32> to vector<128x256xf32>
    %61 = arith.subf %57, %60 : vector<128x256xf32>
    %62 = math.exp %61 : vector<128x256xf32>
    %cst_23 = arith.constant dense<0.000000e+00> : vector<128xf32>
    %63 = vector.multi_reduction <add>, %62, %cst_23 [1] : vector<128x256xf32> to vector<128xf32>
    %64 = vector.shape_cast %63 : vector<128xf32> to vector<128x1xf32>
    %65 = arith.truncf %62 : vector<128x256xf32> to vector<128x256xbf16>
    %cst_24 = arith.constant dense<0.000000e+00> : vector<128x64xf32>
    %66 = tpu.matmul %65, %3, %cst_24 {dimension_numbers = #tpu.dot_dimension_numbers<[1], [0], [0], [1], [0, 0, 1, 1], [], []>} : vector<128x256xbf16>, vector<256x64xbf16>, vector<128x64xf32> -> vector<128x64xf32>
    %67 = tpu.reciprocal %64 {approx = true} : vector<128x1xf32> -> vector<128x1xf32>
    %68 = vector.broadcast %67 : vector<128x1xf32> to vector<128x64xf32>
    %69 = arith.mulf %66, %68 : vector<128x64xf32>
    %c0_25 = arith.constant 0 : index
    %70 = arith.index_cast %52 : i32 to index
    %c0_26 = arith.constant 0 : index
    %71 = vector.load %arg4[%c0_25, %70, %c0_26] : memref<2x256x64xf32, #tpu.memory_space<vmem>>, vector<1x128x64xf32>
    %72 = vector.shape_cast %71 : vector<1x128x64xf32> to vector<128x64xf32>
    %73 = vector.shape_cast %69 : vector<128x64xf32> to vector<1x128x64xf32>
    tpu.vector_store %arg4[%c0_25, %70, %c0_26], %73 {strides = array<i32>} : memref<2x256x64xf32, #tpu.memory_space<vmem>>, vector<1x128x64xf32>,
    %c1_27 = arith.constant 1 : index
    %74 = arith.index_cast %52 : i32 to index
    %c0_28 = arith.constant 0 : index
    %75 = vector.load %arg2[%c1_27, %74, %c0_28] : memref<2x256x256xf32, #tpu.memory_space<vmem>>, vector<1x128x256xf32>
    %76 = vector.shape_cast %75 : vector<1x128x256xf32> to vector<128x256xf32>
    %77 = vector.broadcast %0 : vector<1x256xf32> to vector<128x256xf32>
    %78 = arith.addf %76, %77 : vector<128x256xf32>
    %cst_29 = arith.constant dense<0xFF800000> : vector<128xf32>
    %79 = vector.multi_reduction <maximumf>, %78, %cst_29 [1] : vector<128x256xf32> to vector<128xf32>
    %80 = vector.shape_cast %79 : vector<128xf32> to vector<128x1xf32>
    %81 = vector.broadcast %80 : vector<128x1xf32> to vector<128x256xf32>
    %82 = arith.subf %78, %81 : vector<128x256xf32>
    %83 = math.exp %82 : vector<128x256xf32>
    %cst_30 = arith.constant dense<0.000000e+00> : vector<128xf32>
    %84 = vector.multi_reduction <add>, %83, %cst_30 [1] : vector<128x256xf32> to vector<128xf32>
    %85 = vector.shape_cast %84 : vector<128xf32> to vector<128x1xf32>
    %86 = arith.truncf %83 : vector<128x256xf32> to vector<128x256xbf16>
    %cst_31 = arith.constant dense<0.000000e+00> : vector<128x64xf32>
    %87 = tpu.matmul %86, %6, %cst_31 {dimension_numbers = #tpu.dot_dimension_numbers<[1], [0], [0], [1], [0, 0, 1, 1], [], []>} : vector<128x256xbf16>, vector<256x64xbf16>, vector<128x64xf32> -> vector<128x64xf32>
    %88 = tpu.reciprocal %85 {approx = true} : vector<128x1xf32> -> vector<128x1xf32>
    %89 = vector.broadcast %88 : vector<128x1xf32> to vector<128x64xf32>
    %90 = arith.mulf %87, %89 : vector<128x64xf32>
    %c1_32 = arith.constant 1 : index
    %91 = arith.index_cast %52 : i32 to index
    %c0_33 = arith.constant 0 : index
    %92 = vector.load %arg4[%c1_32, %91, %c0_33] : memref<2x256x64xf32, #tpu.memory_space<vmem>>, vector<1x128x64xf32>
    %93 = vector.shape_cast %92 : vector<1x128x64xf32> to vector<128x64xf32>
    %94 = vector.shape_cast %90 : vector<128x64xf32> to vector<1x128x64xf32>
    tpu.vector_store %arg4[%c1_32, %91, %c0_33], %94 {strides = array<i32>} : memref<2x256x64xf32, #tpu.memory_space<vmem>>, vector<1x128x64xf32>,
    %c2_i32 = arith.constant 2 : i32
    return
  }
  func.func @transform_0(%arg0: i32) -> (i32, i32) {
    %c0_i32 = arith.constant 0 : i32
    %c0_i32_0 = arith.constant 0 : i32
    %c0_i32_1 = arith.constant 0 : i32
    return %c0_i32, %c0_i32_0 : i32, i32
  }
  func.func @transform_1(%arg0: i32) -> (i32, i32, i32) {
    %c0_i32 = arith.constant 0 : i32
    %c0_i32_0 = arith.constant 0 : i32
    %c0_i32_1 = arith.constant 0 : i32
    return %arg0, %c0_i32, %c0_i32_0 : i32, i32, i32
  }
  func.func @transform_2(%arg0: i32) -> (i32, i32, i32) {
    %c0_i32 = arith.constant 0 : i32
    %c0_i32_0 = arith.constant 0 : i32
    %c0_i32_1 = arith.constant 0 : i32
    return %arg0, %c0_i32, %c0_i32_0 : i32, i32, i32
  }
  func.func @transform_3(%arg0: i32) -> (i32, i32, i32) {
    %c0_i32 = arith.constant 0 : i32
    %c0_i32_0 = arith.constant 0 : i32
    %c0_i32_1 = arith.constant 0 : i32
    return %arg0, %c0_i32, %c0_i32_0 : i32, i32, i32
  }
}

</mosaic_0001>

<llo_original>
// kernel: tpu_custom_call.1
$region0: #{tpu_custom_call.1}
  #allocation0 [shape = 'u32[]', space=smem, size = 0x4, offset = 0x4, fixed_abs, tag = 'smem constant byte address 0x4 - core index']
  #allocation1 [shape = 'u32[144,128]{1,0:T(1,128)}', space=vmem, size = 0x12000, scoped, tag = 'internal scratch']
  %s0 = inlined_call_operand.vmem [shape: f32[1,256], index: 0, kind: input, shape index: {}]
  %s1 = inlined_call_operand.hbm [shape: f32[4,256,256], index: 1, kind: input, shape index: {}]
  %s2 = inlined_call_operand.vmem [shape: f32[4,256,64], index: 2, kind: input, shape index: {}]
  %s3 = inlined_call_operand.vmem [shape: f32[4,256,64], index: 3, kind: output, shape index: {}]
  %s4 = sld [smem:[#allocation0]]
  $region49: #{tpu_custom_call.1} parent=0
    _
  %s6 = ssub.s32 1, %s4
  %s7 = scalar_select 0, %s6, %s4
  $region1: #{tpu_custom_call.1} parent=0
    #allocation2 [shape = 'u8[1048576]{0}', space=vmem, size = 0x100000, scoped, tag = 'input window, operand 1']
    #allocation3 [shape = 's32[2]{0}', space=sflag, size = 0x8, scoped, tag = 'scoped memory for tpu_custom_call.1']
    %8 = vsyncpa [#allocation3], 0
    %s9 = scalar_lea.sflag [#allocation3], 1
    %10 = vsyncpa %s9, 0
    loop: start=0, step=1, limit=4
    $region2: #{tpu_custom_call.1} parent=1 // loop_pre_header
      _
    $region3: #{tpu_custom_call.1} parent=1 // loop_header
      %s12 = sphi 0, %s16
      %p13 = scmp.ge.s32.totalorder %s12, 4
      %s20 = sphi 0, %s20
      %s22 = sphi 0, %s20
      %s23 = sphi 0, %s22
      %s37 = sphi 0, %s23
      %s43 = sphi 0, %s45
      %s46 = sphi 0, %s43
      %s47 = sphi 0, %s46
      %s63 = sphi 0, %s47
      %s69 = sphi 0, %s71
      %s72 = sphi 0, %s69
      %s73 = sphi 0, %s72
      %s89 = sphi 0, %s73
      %s95 = sphi 0, %s97
      %s98 = sphi 0, %s95
      %s99 = sphi 0, %s98
      %s115 = sphi 0, %s99
    $region4: #{tpu_custom_call.1} parent=1 // loop_header_branch
      %15 = sbr.rel (%p13) target = $region8
    $region5: #{tpu_custom_call.1} parent=1 // loop_body
      %s17 = ssub.s32 %s12, 1
      %s18 = ssub.s32 %s12, 2
      %s19 = sadd.s32 %s12, 1
      %s21 = sadd.s32 %s20, 1
      %p24 = scmp.eq.s32.totalorder %s12, 1
      %p25 = scmp.ne.s32.totalorder %s20, %s22
      %p26 = scmp.eq.s32.totalorder %s12, 0
      %p27 = por %p25, %p26
      %p28 = scmp.ne.s32.totalorder %s20, %s22
      %p29 = scmp.eq.s32.totalorder %s17, 1
      %p30 = por %p28, %p29
      %p31 = scmp.ne.s32.totalorder %s22, %s23
      %p32 = scmp.eq.s32.totalorder %s17, 0
      %p33 = por %p31, %p32
      %p34 = scmp.ne.s32.totalorder %s22, %s23
      %p35 = scmp.eq.s32.totalorder %s18, 1
      %p36 = por %p34, %p35
      %p38 = scmp.ne.s32.totalorder %s23, %s37
      %p39 = scmp.eq.s32.totalorder %s18, 0
      %p40 = por %p38, %p39
      %s41 = ssub.s32 %s12, %s19
      %p42 = scmp.eq.s32.totalorder %s41, 0
      %s44 = sadd.s32 %s43, 1
      %s45 = scalar_select %p42, %s43, %s44
      %p48 = pneg %p42
      %p49 = scmp.eq.s32.totalorder %s12, 1
      %p50 = por %p48, %p49
      %p51 = scmp.ne.s32.totalorder %s43, %s46
      %p52 = scmp.eq.s32.totalorder %s12, 0
      %p53 = por %p51, %p52
      %p54 = scmp.ne.s32.totalorder %s43, %s46
      %p55 = scmp.eq.s32.totalorder %s17, 1
      %p56 = por %p54, %p55
      %p57 = scmp.ne.s32.totalorder %s46, %s47
      %p58 = scmp.eq.s32.totalorder %s17, 0
      %p59 = por %p57, %p58
      %p60 = scmp.ne.s32.totalorder %s46, %s47
      %p61 = scmp.eq.s32.totalorder %s18, 1
      %p62 = por %p60, %p61
      %p64 = scmp.ne.s32.totalorder %s47, %s63
      %p65 = scmp.eq.s32.totalorder %s18, 0
      %p66 = por %p64, %p65
      %s67 = ssub.s32 %s12, %s19
      %p68 = scmp.eq.s32.totalorder %s67, 0
      %s70 = sadd.s32 %s69, 1
      %s71 = scalar_select %p68, %s69, %s70
      %p74 = pneg %p68
      %p75 = scmp.eq.s32.totalorder %s12, 1
      %p76 = por %p74, %p75
      %p77 = scmp.ne.s32.totalorder %s69, %s72
      %p78 = scmp.eq.s32.totalorder %s12, 0
      %p79 = por %p77, %p78
      %p80 = scmp.ne.s32.totalorder %s69, %s72
      %p81 = scmp.eq.s32.totalorder %s17, 1
      %p82 = por %p80, %p81
      %p83 = scmp.ne.s32.totalorder %s72, %s73
      %p84 = scmp.eq.s32.totalorder %s17, 0
      %p85 = por %p83, %p84
      %p86 = scmp.ne.s32.totalorder %s72, %s73
      %p87 = scmp.eq.s32.totalorder %s18, 1
      %p88 = por %p86, %p87
      %p90 = scmp.ne.s32.totalorder %s73, %s89
      %p91 = scmp.eq.s32.totalorder %s18, 0
      %p92 = por %p90, %p91
      %s93 = ssub.s32 %s12, %s19
      %p94 = scmp.eq.s32.totalorder %s93, 0
      %s96 = sadd.s32 %s95, 1
      %s97 = scalar_select %p94, %s95, %s96
      %p100 = pneg %p94
      %p101 = scmp.eq.s32.totalorder %s12, 1
      %p102 = por %p100, %p101
      %p103 = scmp.ne.s32.totalorder %s95, %s98
      %p104 = scmp.eq.s32.totalorder %s12, 0
      %p105 = por %p103, %p104
      %p106 = scmp.ne.s32.totalorder %s95, %s98
      %p107 = scmp.eq.s32.totalorder %s17, 1
      %p108 = por %p106, %p107
      %p109 = scmp.ne.s32.totalorder %s98, %s99
      %p110 = scmp.eq.s32.totalorder %s17, 0
      %p111 = por %p109, %p110
      %p112 = scmp.ne.s32.totalorder %s98, %s99
      %p113 = scmp.eq.s32.totalorder %s18, 1
      %p114 = por %p112, %p113
      %p116 = scmp.ne.s32.totalorder %s99, %s115
      %p117 = scmp.eq.s32.totalorder %s18, 0
      %p118 = por %p116, %p117
      %p119 = scmp.le.s32.totalorder 1, %s12
      %p120 = scmp.lt.s32.totalorder %s12, 3
      %p121 = pnand %p119, %p120
      %p122 = pneg %p121
      // Predicated region
      $region9: #{tpu_custom_call.1} parent=5 // pred_check
        _
      $region10: #{tpu_custom_call.1} parent=5 // pred_check_branch
        %124 = sbr.rel (%p121) target = $region12
      $region11: #{tpu_custom_call.1} parent=5 // pred_region
        %s125 = ssub.s32 %s12, 1
        // Predicated region
        $region13: #{tpu_custom_call.1} parent=11 // pred_check
          %p126 = pneg %p33
        $region14: #{tpu_custom_call.1} parent=11 // pred_check_branch
          %128 = sbr.rel (%p126) target = $region16
        $region15: #{tpu_custom_call.1} parent=11 // pred_region
          _
        $region16: #{tpu_custom_call.1} parent=11 // pred_fallthru
          _
      $region12: #{tpu_custom_call.1} parent=5 // pred_fallthru
        _
      %p129 = scmp.lt.s32.totalorder %s12, 2
      // Predicated region
      $region17: #{tpu_custom_call.1} parent=5 // pred_check
        %p130 = pneg %p129
      $region18: #{tpu_custom_call.1} parent=5 // pred_check_branch
        %132 = sbr.rel (%p130) target = $region20
      $region19: #{tpu_custom_call.1} parent=5 // pred_region
        // Predicated region
        $region21: #{tpu_custom_call.1} parent=19 // pred_check
          %p133 = pneg %p53
        $region22: #{tpu_custom_call.1} parent=19 // pred_check_branch
          %135 = sbr.rel (%p133) target = $region24
        $region23: #{tpu_custom_call.1} parent=19 // pred_region
          %s136 = sand.u32 %s43, 1
          %s137 = scalar_lea.sflag [#allocation3], %s136
          %s138 = sand.u32 %s43, 1
          %s139 = smul.addr %s138, 1024
          %s140 = scalar_lea.vmem [#allocation2], %s139
          %s141 = smul.u32 2, %s12
          %s143 = ssub.s32 16384, 16384
          %144 = vsyncadd %s137, %s143
          %s145 = smul.addr %s141, 64
          %s146 = smul.addr %s145, 128
          %s147 = scalar_lea.hbm %s1, %s146
          %s148 = sshll.u32 %s140, 4
          %s149 = int_to_ptr.vmem [resolvable:$true] %s148
          %154 = dma.hbm_to_vmem [thread:$0]  %s147, 16384, %s149, %s137, 256, 256, 16
        $region24: #{tpu_custom_call.1} parent=19 // pred_fallthru
          _
        // Predicated region
        $region25: #{tpu_custom_call.1} parent=19 // pred_check
          %p155 = pneg %p79
        $region26: #{tpu_custom_call.1} parent=19 // pred_check_branch
          %157 = sbr.rel (%p155) target = $region28
        $region27: #{tpu_custom_call.1} parent=19 // pred_region
          %s158 = smul.u32 2, %s12
          %p159 = scmp.lt.s32.totalorder %s158, 3
          %s160 = scalar_select %p159, %s158, 3
          %s161 = smul.addr %s160, 32
          %s162 = smul.addr %s161, 8
          %s163 = scalar_lea.vmem %s2, %s162
          %s164 = smul.u32 2, %s12
        $region28: #{tpu_custom_call.1} parent=19 // pred_fallthru
          _
      $region20: #{tpu_custom_call.1} parent=5 // pred_fallthru
        _
      %p165 = scmp.le.s32.totalorder 1, %s12
      %p166 = scmp.lt.s32.totalorder %s12, 3
      %p167 = pnand %p165, %p166
      %p168 = pneg %p167
      // Predicated region
      $region29: #{tpu_custom_call.1} parent=5 // pred_check
        _
      $region30: #{tpu_custom_call.1} parent=5 // pred_check_branch
        %170 = sbr.rel (%p167) target = $region32
      $region31: #{tpu_custom_call.1} parent=5 // pred_region
        %s171 = ssub.s32 %s12, 1
        %s172 = sand.u32 %s46, 1
        %s173 = scalar_lea.sflag [#allocation3], %s172
        %s174 = sand.u32 %s46, 1
        %s175 = smul.addr %s174, 1024
        %s176 = scalar_lea.vmem [#allocation2], %s175
        // Predicated region
        $region33: #{tpu_custom_call.1} parent=31 // pred_check
          %p177 = pneg %p59
        $region34: #{tpu_custom_call.1} parent=31 // pred_check_branch
          %179 = sbr.rel (%p177) target = $region36
        $region35: #{tpu_custom_call.1} parent=31 // pred_region
          %180 = dma.done %s173, 16384
        $region36: #{tpu_custom_call.1} parent=31 // pred_fallthru
          _
        %p181 = pneg %p33
        %p182 = pneg %p30
        %s183 = sand.u32 %s46, 1
        %s184 = scalar_lea.sflag [#allocation3], %s183
        %s185 = sand.u32 %s46, 1
        %s186 = smul.addr %s185, 1024
        %s187 = scalar_lea.vmem [#allocation2], %s186
        %p188 = pneg %p59
        %p189 = pneg %p56
        %s190 = smul.u32 2, %s17
        %p191 = scmp.lt.s32.totalorder %s190, 3
        %s192 = scalar_select %p191, %s190, 3
        %s193 = smul.addr %s192, 32
        %s194 = smul.addr %s193, 8
        %s195 = scalar_lea.vmem %s2, %s194
        %p196 = pneg %p85
        %p197 = pneg %p82
        %p198 = pneg %p111
        %p199 = pneg %p108
        %s200 = smul.u32 2, %s17
        %p201 = scmp.lt.s32.totalorder %s200, 3
        %s202 = scalar_select %p201, %s200, 3
        %s203 = smul.addr %s202, 32
        %s204 = smul.addr %s203, 8
        %s205 = scalar_lea.vmem %s3, %s204
        %s206 = smul.u32 2, %s17
        %s207 = smul.u32 2, %s17
        %p208 = scmp.lt.s32.totalorder %s207, 3
        %s209 = scalar_select %p208, %s207, 3
        %s210 = smul.addr %s209, 32
        %s211 = smul.addr %s210, 8
        %s212 = scalar_lea.vmem %s2, %s211
        %s213 = smul.u32 2, %s17
        %s214 = smul.u32 2, %s17
        %p215 = scmp.lt.s32.totalorder %s214, 3
        %s216 = scalar_select %p215, %s214, 3
        %s217 = smul.addr %s216, 32
        %s218 = smul.addr %s217, 8
        %s219 = scalar_lea.vmem %s3, %s218
        %s220 = smul.u32 2, %s17
        %v222 = vld [vmem:[%s0] sm:$0x3]
        %v223 = vld [vmem:[%s212] sm:$0xff]
        %v224 = vld [vmem:[%s212 + $0x8] sm:$0xff]
        %v225 = vld [vmem:[%s212 + $0x10] sm:$0xff]
        %v226 = vld [vmem:[%s212 + $0x18] sm:$0xff]
        %v227 = vld [vmem:[%s212 + $0x20] sm:$0xff]
        %v228 = vld [vmem:[%s212 + $0x28] sm:$0xff]
        %v229 = vld [vmem:[%s212 + $0x30] sm:$0xff]
        %v230 = vld [vmem:[%s212 + $0x38] sm:$0xff]
        %v231 = vld [vmem:[%s212 + $0x40] sm:$0xff]
        %v232 = vld [vmem:[%s212 + $0x48] sm:$0xff]
        %v233 = vld [vmem:[%s212 + $0x50] sm:$0xff]
        %v234 = vld [vmem:[%s212 + $0x58] sm:$0xff]
        %v235 = vld [vmem:[%s212 + $0x60] sm:$0xff]
        %v236 = vld [vmem:[%s212 + $0x68] sm:$0xff]
        %v237 = vld [vmem:[%s212 + $0x70] sm:$0xff]
        %v238 = vld [vmem:[%s212 + $0x78] sm:$0xff]
        %v239 = vld [vmem:[%s212 + $0x80] sm:$0xff]
        %v240 = vld [vmem:[%s212 + $0x88] sm:$0xff]
        %v241 = vld [vmem:[%s212 + $0x90] sm:$0xff]
        %v242 = vld [vmem:[%s212 + $0x98] sm:$0xff]
        %v243 = vld [vmem:[%s212 + $0xa0] sm:$0xff]
        %v244 = vld [vmem:[%s212 + $0xa8] sm:$0xff]
        %v245 = vld [vmem:[%s212 + $0xb0] sm:$0xff]
        %v246 = vld [vmem:[%s212 + $0xb8] sm:$0xff]
        %v247 = vld [vmem:[%s212 + $0xc0] sm:$0xff]
        %v248 = vld [vmem:[%s212 + $0xc8] sm:$0xff]
        %v249 = vld [vmem:[%s212 + $0xd0] sm:$0xff]
        %v250 = vld [vmem:[%s212 + $0xd8] sm:$0xff]
        %v251 = vld [vmem:[%s212 + $0xe0] sm:$0xff]
        %v252 = vld [vmem:[%s212 + $0xe8] sm:$0xff]
        %v253 = vld [vmem:[%s212 + $0xf0] sm:$0xff]
        %v254 = vld [vmem:[%s212 + $0xf8] sm:$0xff]
        %v255 = vpack.c.bf16 %v224, %v223
        %v256 = vpack.c.bf16 %v226, %v225
        %v257 = vpack.c.bf16 %v228, %v227
        %v258 = vpack.c.bf16 %v230, %v229
        %v259 = vpack.c.bf16 %v232, %v231
        %v260 = vpack.c.bf16 %v234, %v233
        %v261 = vpack.c.bf16 %v236, %v235
        %v262 = vpack.c.bf16 %v238, %v237
        %v263 = vpack.c.bf16 %v240, %v239
        %v264 = vpack.c.bf16 %v242, %v241
        %v265 = vpack.c.bf16 %v244, %v243
        %v266 = vpack.c.bf16 %v246, %v245
        %v267 = vpack.c.bf16 %v248, %v247
        %v268 = vpack.c.bf16 %v250, %v249
        %v269 = vpack.c.bf16 %v252, %v251
        %v270 = vpack.c.bf16 %v254, %v253
        %s271 = scalar_lea.vmem %s212, 256
        %v272 = vld [vmem:[%s271] sm:$0xff]
        %v273 = vld [vmem:[%s271 + $0x8] sm:$0xff]
        %v274 = vld [vmem:[%s271 + $0x10] sm:$0xff]
        %v275 = vld [vmem:[%s271 + $0x18] sm:$0xff]
        %v276 = vld [vmem:[%s271 + $0x20] sm:$0xff]
        %v277 = vld [vmem:[%s271 + $0x28] sm:$0xff]
        %v278 = vld [vmem:[%s271 + $0x30] sm:$0xff]
        %v279 = vld [vmem:[%s271 + $0x38] sm:$0xff]
        %v280 = vld [vmem:[%s271 + $0x40] sm:$0xff]
        %v281 = vld [vmem:[%s271 + $0x48] sm:$0xff]
        %v282 = vld [vmem:[%s271 + $0x50] sm:$0xff]
        %v283 = vld [vmem:[%s271 + $0x58] sm:$0xff]
        %v284 = vld [vmem:[%s271 + $0x60] sm:$0xff]
        %v285 = vld [vmem:[%s271 + $0x68] sm:$0xff]
        %v286 = vld [vmem:[%s271 + $0x70] sm:$0xff]
        %v287 = vld [vmem:[%s271 + $0x78] sm:$0xff]
        %v288 = vld [vmem:[%s271 + $0x80] sm:$0xff]
        %v289 = vld [vmem:[%s271 + $0x88] sm:$0xff]
        %v290 = vld [vmem:[%s271 + $0x90] sm:$0xff]
        %v291 = vld [vmem:[%s271 + $0x98] sm:$0xff]
        %v292 = vld [vmem:[%s271 + $0xa0] sm:$0xff]
        %v293 = vld [vmem:[%s271 + $0xa8] sm:$0xff]
        %v294 = vld [vmem:[%s271 + $0xb0] sm:$0xff]
        %v295 = vld [vmem:[%s271 + $0xb8] sm:$0xff]
        %v296 = vld [vmem:[%s271 + $0xc0] sm:$0xff]
        %v297 = vld [vmem:[%s271 + $0xc8] sm:$0xff]
        %v298 = vld [vmem:[%s271 + $0xd0] sm:$0xff]
        %v299 = vld [vmem:[%s271 + $0xd8] sm:$0xff]
        %v300 = vld [vmem:[%s271 + $0xe0] sm:$0xff]
        %v301 = vld [vmem:[%s271 + $0xe8] sm:$0xff]
        %v302 = vld [vmem:[%s271 + $0xf0] sm:$0xff]
        %v303 = vld [vmem:[%s271 + $0xf8] sm:$0xff]
        %v304 = vpack.c.bf16 %v273, %v272
        %v305 = vpack.c.bf16 %v275, %v274
        %v306 = vpack.c.bf16 %v277, %v276
        %v307 = vpack.c.bf16 %v279, %v278
        %v308 = vpack.c.bf16 %v281, %v280
        %v309 = vpack.c.bf16 %v283, %v282
        %v310 = vpack.c.bf16 %v285, %v284
        %v311 = vpack.c.bf16 %v287, %v286
        %v312 = vpack.c.bf16 %v289, %v288
        %v313 = vpack.c.bf16 %v291, %v290
        %v314 = vpack.c.bf16 %v293, %v292
        %v315 = vpack.c.bf16 %v295, %v294
        %v316 = vpack.c.bf16 %v297, %v296
        %v317 = vpack.c.bf16 %v299, %v298
        %v318 = vpack.c.bf16 %v301, %v300
        %v319 = vpack.c.bf16 %v303, %v302
        %s320 = smul.u32 0, 2
        %s321 = smul.addr %s320, 8
        %s322 = scalar_lea.vmem %s176, %s321 [#allocation2]
        %v323 = vld [vmem:[%s322] sm:$0xff]
        %v324 = vld [vmem:[%s322 + $0x8] sm:$0xff]
        %v325 = vld [vmem:[%s322 + $0x10] sm:$0xff]
        %v326 = vld [vmem:[%s322 + $0x18] sm:$0xff]
        %v327 = vld [vmem:[%s322 + $0x20] sm:$0xff]
        %v328 = vld [vmem:[%s322 + $0x28] sm:$0xff]
        %v329 = vld [vmem:[%s322 + $0x30] sm:$0xff]
        %v330 = vld [vmem:[%s322 + $0x38] sm:$0xff]
        %v331 = vld [vmem:[%s322 + $0x40] sm:$0xff]
        %v332 = vld [vmem:[%s322 + $0x48] sm:$0xff]
        %v333 = vld [vmem:[%s322 + $0x50] sm:$0xff]
        %v334 = vld [vmem:[%s322 + $0x58] sm:$0xff]
        %v335 = vld [vmem:[%s322 + $0x60] sm:$0xff]
        %v336 = vld [vmem:[%s322 + $0x68] sm:$0xff]
        %v337 = vld [vmem:[%s322 + $0x70] sm:$0xff]
        %v338 = vld [vmem:[%s322 + $0x78] sm:$0xff]
        %v339 = vld [vmem:[%s322 + $0x80] sm:$0xff]
        %v340 = vld [vmem:[%s322 + $0x88] sm:$0xff]
        %v341 = vld [vmem:[%s322 + $0x90] sm:$0xff]
        %v342 = vld [vmem:[%s322 + $0x98] sm:$0xff]
        %v343 = vld [vmem:[%s322 + $0xa0] sm:$0xff]
        %v344 = vld [vmem:[%s322 + $0xa8] sm:$0xff]
        %v345 = vld [vmem:[%s322 + $0xb0] sm:$0xff]
        %v346 = vld [vmem:[%s322 + $0xb8] sm:$0xff]
        %v347 = vld [vmem:[%s322 + $0xc0] sm:$0xff]
        %v348 = vld [vmem:[%s322 + $0xc8] sm:$0xff]
        %v349 = vld [vmem:[%s322 + $0xd0] sm:$0xff]
        %v350 = vld [vmem:[%s322 + $0xd8] sm:$0xff]
        %v351 = vld [vmem:[%s322 + $0xe0] sm:$0xff]
        %v352 = vld [vmem:[%s322 + $0xe8] sm:$0xff]
        %v353 = vld [vmem:[%s322 + $0xf0] sm:$0xff]
        %v354 = vld [vmem:[%s322 + $0xf8] sm:$0xff]
        %v356 = vlaneseq
        %v357 = vshrl.u32 %v356, 7
        %v358 = vsub.s32 0, %v357
        %v359 = vrot.slane %v222, %v358
        %v360 = vlaneseq
        %v361 = vshrl.u32 %v360, 7
        %v362 = vsub.s32 1, %v361
        %v363 = vrot.slane %v222, %v362
        %v366 = vadd.f32 %v323, %v359
        %v367 = vadd.f32 %v324, %v363
        %v368 = vadd.f32 %v325, %v359
        %v369 = vadd.f32 %v326, %v363
        %v370 = vadd.f32 %v327, %v359
        %v371 = vadd.f32 %v328, %v363
        %v372 = vadd.f32 %v329, %v359
        %v373 = vadd.f32 %v330, %v363
        %v374 = vadd.f32 %v331, %v359
        %v375 = vadd.f32 %v332, %v363
        %v376 = vadd.f32 %v333, %v359
        %v377 = vadd.f32 %v334, %v363
        %v378 = vadd.f32 %v335, %v359
        %v379 = vadd.f32 %v336, %v363
        %v380 = vadd.f32 %v337, %v359
        %v381 = vadd.f32 %v338, %v363
        %v382 = vadd.f32 %v339, %v359
        %v383 = vadd.f32 %v340, %v363
        %v384 = vadd.f32 %v341, %v359
        %v385 = vadd.f32 %v342, %v363
        %v386 = vadd.f32 %v343, %v359
        %v387 = vadd.f32 %v344, %v363
        %v388 = vadd.f32 %v345, %v359
        %v389 = vadd.f32 %v346, %v363
        %v390 = vadd.f32 %v347, %v359
        %v391 = vadd.f32 %v348, %v363
        %v392 = vadd.f32 %v349, %v359
        %v393 = vadd.f32 %v350, %v363
        %v394 = vadd.f32 %v351, %v359
        %v395 = vadd.f32 %v352, %v363
        %v396 = vadd.f32 %v353, %v359
        %v397 = vadd.f32 %v354, %v363
        %v398 = vmax.f32 %v366, %v367
        %399 = vmax.xlane.f32.xlu0 %v398
        %v400 = vpop.xlane.xlu0 %399
        %v401 = vmax.f32 %v368, %v369
        %402 = vmax.xlane.f32.xlu0 %v401
        %v403 = vpop.xlane.xlu0 %402
        %v404 = vmax.f32 %v370, %v371
        %405 = vmax.xlane.f32.xlu0 %v404
        %v406 = vpop.xlane.xlu0 %405
        %v407 = vmax.f32 %v372, %v373
        %408 = vmax.xlane.f32.xlu0 %v407
        %v409 = vpop.xlane.xlu0 %408
        %v410 = vmax.f32 %v374, %v375
        %411 = vmax.xlane.f32.xlu0 %v410
        %v412 = vpop.xlane.xlu0 %411
        %v413 = vmax.f32 %v376, %v377
        %414 = vmax.xlane.f32.xlu0 %v413
        %v415 = vpop.xlane.xlu0 %414
        %v416 = vmax.f32 %v378, %v379
        %417 = vmax.xlane.f32.xlu0 %v416
        %v418 = vpop.xlane.xlu0 %417
        %v419 = vmax.f32 %v380, %v381
        %420 = vmax.xlane.f32.xlu0 %v419
        %v421 = vpop.xlane.xlu0 %420
        %v422 = vmax.f32 %v382, %v383
        %423 = vmax.xlane.f32.xlu0 %v422
        %v424 = vpop.xlane.xlu0 %423
        %v425 = vmax.f32 %v384, %v385
        %426 = vmax.xlane.f32.xlu0 %v425
        %v427 = vpop.xlane.xlu0 %426
        %v428 = vmax.f32 %v386, %v387
        %429 = vmax.xlane.f32.xlu0 %v428
        %v430 = vpop.xlane.xlu0 %429
        %v431 = vmax.f32 %v388, %v389
        %432 = vmax.xlane.f32.xlu0 %v431
        %v433 = vpop.xlane.xlu0 %432
        %v434 = vmax.f32 %v390, %v391
        %435 = vmax.xlane.f32.xlu0 %v434
        %v436 = vpop.xlane.xlu0 %435
        %v437 = vmax.f32 %v392, %v393
        %438 = vmax.xlane.f32.xlu0 %v437
        %v439 = vpop.xlane.xlu0 %438
        %v440 = vmax.f32 %v394, %v395
        %441 = vmax.xlane.f32.xlu0 %v440
        %v442 = vpop.xlane.xlu0 %441
        %v443 = vmax.f32 %v396, %v397
        %444 = vmax.xlane.f32.xlu0 %v443
        %v445 = vpop.xlane.xlu0 %444
        %v446 = vsub.f32 %v366, %v400
        %v447 = vsub.f32 %v367, %v400
        %v448 = vsub.f32 %v368, %v403
        %v449 = vsub.f32 %v369, %v403
        %v450 = vsub.f32 %v370, %v406
        %v451 = vsub.f32 %v371, %v406
        %v452 = vsub.f32 %v372, %v409
        %v453 = vsub.f32 %v373, %v409
        %v454 = vsub.f32 %v374, %v412
        %v455 = vsub.f32 %v375, %v412
        %v456 = vsub.f32 %v376, %v415
        %v457 = vsub.f32 %v377, %v415
        %v458 = vsub.f32 %v378, %v418
        %v459 = vsub.f32 %v379, %v418
        %v460 = vsub.f32 %v380, %v421
        %v461 = vsub.f32 %v381, %v421
        %v462 = vsub.f32 %v382, %v424
        %v463 = vsub.f32 %v383, %v424
        %v464 = vsub.f32 %v384, %v427
        %v465 = vsub.f32 %v385, %v427
        %v466 = vsub.f32 %v386, %v430
        %v467 = vsub.f32 %v387, %v430
        %v468 = vsub.f32 %v388, %v433
        %v469 = vsub.f32 %v389, %v433
        %v470 = vsub.f32 %v390, %v436
        %v471 = vsub.f32 %v391, %v436
        %v472 = vsub.f32 %v392, %v439
        %v473 = vsub.f32 %v393, %v439
        %v474 = vsub.f32 %v394, %v442
        %v475 = vsub.f32 %v395, %v442
        %v476 = vsub.f32 %v396, %v445
        %v477 = vsub.f32 %v397, %v445
        %v478 = vmul.f32 %v446, 1.442695
        %v479 = vpow.pop %v478
        %v480 = vmul.f32 %v447, 1.442695
        %v481 = vpow.pop %v480
        %v482 = vmul.f32 %v448, 1.442695
        %v483 = vpow.pop %v482
        %v484 = vmul.f32 %v449, 1.442695
        %v485 = vpow.pop %v484
        %v486 = vmul.f32 %v450, 1.442695
        %v487 = vpow.pop %v486
        %v488 = vmul.f32 %v451, 1.442695
        %v489 = vpow.pop %v488
        %v490 = vmul.f32 %v452, 1.442695
        %v491 = vpow.pop %v490
        %v492 = vmul.f32 %v453, 1.442695
        %v493 = vpow.pop %v492
        %v494 = vmul.f32 %v454, 1.442695
        %v495 = vpow.pop %v494
        %v496 = vmul.f32 %v455, 1.442695
        %v497 = vpow.pop %v496
        %v498 = vmul.f32 %v456, 1.442695
        %v499 = vpow.pop %v498
        %v500 = vmul.f32 %v457, 1.442695
        %v501 = vpow.pop %v500
        %v502 = vmul.f32 %v458, 1.442695
        %v503 = vpow.pop %v502
        %v504 = vmul.f32 %v459, 1.442695
        %v505 = vpow.pop %v504
        %v506 = vmul.f32 %v460, 1.442695
        %v507 = vpow.pop %v506
        %v508 = vmul.f32 %v461, 1.442695
        %v509 = vpow.pop %v508
        %v510 = vmul.f32 %v462, 1.442695
        %v511 = vpow.pop %v510
        %v512 = vmul.f32 %v463, 1.442695
        %v513 = vpow.pop %v512
        %v514 = vmul.f32 %v464, 1.442695
        %v515 = vpow.pop %v514
        %v516 = vmul.f32 %v465, 1.442695
        %v517 = vpow.pop %v516
        %v518 = vmul.f32 %v466, 1.442695
        %v519 = vpow.pop %v518
        %v520 = vmul.f32 %v467, 1.442695
        %v521 = vpow.pop %v520
        %v522 = vmul.f32 %v468, 1.442695
        %v523 = vpow.pop %v522
        %v524 = vmul.f32 %v469, 1.442695
        %v525 = vpow.pop %v524
        %v526 = vmul.f32 %v470, 1.442695
        %v527 = vpow.pop %v526
        %v528 = vmul.f32 %v471, 1.442695
        %v529 = vpow.pop %v528
        %v530 = vmul.f32 %v472, 1.442695
        %v531 = vpow.pop %v530
        %v532 = vmul.f32 %v473, 1.442695
        %v533 = vpow.pop %v532
        %v534 = vmul.f32 %v474, 1.442695
        %v535 = vpow.pop %v534
        %v536 = vmul.f32 %v475, 1.442695
        %v537 = vpow.pop %v536
        %v538 = vmul.f32 %v476, 1.442695
        %v539 = vpow.pop %v538
        %v540 = vmul.f32 %v477, 1.442695
        %v541 = vpow.pop %v540
        %v542 = vadd.f32 %v479, %v481
        %543 = vadd.xlane.f32.xlu0 %v542
        %v544 = vpop.xlane.xlu0 %543
        %v545 = vadd.f32 %v483, %v485
        %546 = vadd.xlane.f32.xlu0 %v545
        %v547 = vpop.xlane.xlu0 %546
        %v548 = vadd.f32 %v487, %v489
        %549 = vadd.xlane.f32.xlu0 %v548
        %v550 = vpop.xlane.xlu0 %549
        %v551 = vadd.f32 %v491, %v493
        %552 = vadd.xlane.f32.xlu0 %v551
        %v553 = vpop.xlane.xlu0 %552
        %v554 = vadd.f32 %v495, %v497
        %555 = vadd.xlane.f32.xlu0 %v554
        %v556 = vpop.xlane.xlu0 %555
        %v557 = vadd.f32 %v499, %v501
        %558 = vadd.xlane.f32.xlu0 %v557
        %v559 = vpop.xlane.xlu0 %558
        %v560 = vadd.f32 %v503, %v505
        %561 = vadd.xlane.f32.xlu0 %v560
        %v562 = vpop.xlane.xlu0 %561
        %v563 = vadd.f32 %v507, %v509
        %564 = vadd.xlane.f32.xlu0 %v563
        %v565 = vpop.xlane.xlu0 %564
        %v566 = vadd.f32 %v511, %v513
        %567 = vadd.xlane.f32.xlu0 %v566
        %v568 = vpop.xlane.xlu0 %567
        %v569 = vadd.f32 %v515, %v517
        %570 = vadd.xlane.f32.xlu0 %v569
        %v571 = vpop.xlane.xlu0 %570
        %v572 = vadd.f32 %v519, %v521
        %573 = vadd.xlane.f32.xlu0 %v572
        %v574 = vpop.xlane.xlu0 %573
        %v575 = vadd.f32 %v523, %v525
        %576 = vadd.xlane.f32.xlu0 %v575
        %v577 = vpop.xlane.xlu0 %576
        %v578 = vadd.f32 %v527, %v529
        %579 = vadd.xlane.f32.xlu0 %v578
        %v580 = vpop.xlane.xlu0 %579
        %v581 = vadd.f32 %v531, %v533
        %582 = vadd.xlane.f32.xlu0 %v581
        %v583 = vpop.xlane.xlu0 %582
        %v584 = vadd.f32 %v535, %v537
        %585 = vadd.xlane.f32.xlu0 %v584
        %v586 = vpop.xlane.xlu0 %585
        %v587 = vadd.f32 %v539, %v541
        %588 = vadd.xlane.f32.xlu0 %v587
        %v589 = vpop.xlane.xlu0 %588
        %v590 = vpack.c.bf16 %v483, %v479
        %v591 = vpack.c.bf16 %v485, %v481
        %v592 = vpack.c.bf16 %v491, %v487
        %v593 = vpack.c.bf16 %v493, %v489
        %v594 = vpack.c.bf16 %v499, %v495
        %v595 = vpack.c.bf16 %v501, %v497
        %v596 = vpack.c.bf16 %v507, %v503
        %v597 = vpack.c.bf16 %v509, %v505
        %v598 = vpack.c.bf16 %v515, %v511
        %v599 = vpack.c.bf16 %v517, %v513
        %v600 = vpack.c.bf16 %v523, %v519
        %v601 = vpack.c.bf16 %v525, %v521
        %v602 = vpack.c.bf16 %v531, %v527
        %v603 = vpack.c.bf16 %v533, %v529
        %v604 = vpack.c.bf16 %v539, %v535
        %v605 = vpack.c.bf16 %v541, %v537
        %606 = vmatprep.subr.bf16.mxu0 0
        %607 = vmatpush1.bf16.msra.mxu0 %v262
        %608 = vmatprep.subr.bf16.mxu0 0
        %609 = vmatpush1.bf16.msra.mxu0 %v261
        %610 = vmatprep.subr.bf16.mxu0 0
        %611 = vmatpush1.bf16.msra.mxu0 %v260
        %612 = vmatprep.subr.bf16.mxu0 0
        %613 = vmatpush1.bf16.msra.mxu0 %v259
        %614 = vmatprep.subr.bf16.mxu0 0
        %615 = vmatpush1.bf16.msra.mxu0 %v258
        %616 = vmatprep.subr.bf16.mxu0 0
        %617 = vmatpush1.bf16.msra.mxu0 %v257
        %618 = vmatprep.subr.bf16.mxu0 0
        %619 = vmatpush1.bf16.msra.mxu0 %v256
        %620 = vmatprep.subr.bf16.mxu0 0
        %621 = vmatpush1.bf16.msra.mxu0 %v255
        %622 = vmatprep.subr.bf16.mxu0 0
        %623 = vmatpush2.bf16.msra.mxu0 %v270
        %624 = vmatprep.subr.bf16.mxu0 0
        %625 = vmatpush2.bf16.msra.mxu0 %v269
        %626 = vmatprep.subr.bf16.mxu0 0
        %627 = vmatpush2.bf16.msra.mxu0 %v268
        %628 = vmatprep.subr.bf16.mxu0 0
        %629 = vmatpush2.bf16.msra.mxu0 %v267
        %630 = vmatprep.subr.bf16.mxu0 0
        %631 = vmatpush2.bf16.msra.mxu0 %v266
        %632 = vmatprep.subr.bf16.mxu0 0
        %633 = vmatpush2.bf16.msra.mxu0 %v265
        %634 = vmatprep.subr.bf16.mxu0 0
        %635 = vmatpush2.bf16.msra.mxu0 %v264
        %636 = vmatprep.subr.bf16.mxu0 0
        %637 = vmatpush2.bf16.msra.mxu0 %v263
        %638 = vmatprep.mubr.bf16.mxu0 %v591
        %639 = vmatmul.mubr.bf16.gmra.mxu0 %v590
        %v640 = vpop.f32.mrf.mxu0
        %v641 = vadd.f32 0.0, %v640
        %v642 = vpop.f32.mrf.mxu0
        %v643 = vpop.f32.mrf.mxu0
        %v644 = vadd.f32 0.0, %v643
        %v645 = vpop.f32.mrf.mxu0
        %646 = vmatprep.mubr.bf16.mxu0 %v593
        %647 = vmatmul.mubr.bf16.gmra.mxu0 %v592
        %v648 = vpop.f32.mrf.mxu0
        %v649 = vadd.f32 0.0, %v648
        %v650 = vpop.f32.mrf.mxu0
        %v651 = vpop.f32.mrf.mxu0
        %v652 = vadd.f32 0.0, %v651
        %v653 = vpop.f32.mrf.mxu0
        %654 = vmatprep.mubr.bf16.mxu0 %v595
        %655 = vmatmul.mubr.bf16.gmra.mxu0 %v594
        %v656 = vpop.f32.mrf.mxu0
        %v657 = vadd.f32 0.0, %v656
        %v658 = vpop.f32.mrf.mxu0
        %v659 = vpop.f32.mrf.mxu0
        %v660 = vadd.f32 0.0, %v659
        %v661 = vpop.f32.mrf.mxu0
        %662 = vmatprep.mubr.bf16.mxu0 %v597
        %663 = vmatmul.mubr.bf16.gmra.mxu0 %v596
        %v664 = vpop.f32.mrf.mxu0
        %v665 = vadd.f32 0.0, %v664
        %v666 = vpop.f32.mrf.mxu0
        %v667 = vpop.f32.mrf.mxu0
        %v668 = vadd.f32 0.0, %v667
        %v669 = vpop.f32.mrf.mxu0
        %670 = vmatprep.mubr.bf16.mxu0 %v599
        %671 = vmatmul.mubr.bf16.gmra.mxu0 %v598
        %v672 = vpop.f32.mrf.mxu0
        %v673 = vadd.f32 0.0, %v672
        %v674 = vpop.f32.mrf.mxu0
        %v675 = vpop.f32.mrf.mxu0
        %v676 = vadd.f32 0.0, %v675
        %v677 = vpop.f32.mrf.mxu0
        %678 = vmatprep.mubr.bf16.mxu0 %v601
        %679 = vmatmul.mubr.bf16.gmra.mxu0 %v600
        %v680 = vpop.f32.mrf.mxu0
        %v681 = vadd.f32 0.0, %v680
        %v682 = vpop.f32.mrf.mxu0
        %v683 = vpop.f32.mrf.mxu0
        %v684 = vadd.f32 0.0, %v683
        %v685 = vpop.f32.mrf.mxu0
        %686 = vmatprep.mubr.bf16.mxu0 %v603
        %687 = vmatmul.mubr.bf16.gmra.mxu0 %v602
        %v688 = vpop.f32.mrf.mxu0
        %v689 = vadd.f32 0.0, %v688
        %v690 = vpop.f32.mrf.mxu0
        %v691 = vpop.f32.mrf.mxu0
        %v692 = vadd.f32 0.0, %v691
        %v693 = vpop.f32.mrf.mxu0
        %694 = vmatprep.mubr.bf16.mxu0 %v605
        %695 = vmatmul.mubr.bf16.gmra.mxu0 %v604
        %v696 = vpop.f32.mrf.mxu0
        %v697 = vadd.f32 0.0, %v696
        %v698 = vpop.f32.mrf.mxu0
        %v699 = vpop.f32.mrf.mxu0
        %v700 = vadd.f32 0.0, %v699
        %v701 = vpop.f32.mrf.mxu0
        %702 = vdwg.mxu0
        %v703 = vrcp.pop %v544
        %v704 = vrcp.pop %v547
        %v705 = vrcp.pop %v550
        %v706 = vrcp.pop %v553
        %v707 = vrcp.pop %v556
        %v708 = vrcp.pop %v559
        %v709 = vrcp.pop %v562
        %v710 = vrcp.pop %v565
        %v711 = vrcp.pop %v568
        %v712 = vrcp.pop %v571
        %v713 = vrcp.pop %v574
        %v714 = vrcp.pop %v577
        %v715 = vrcp.pop %v580
        %v716 = vrcp.pop %v583
        %v717 = vrcp.pop %v586
        %v718 = vrcp.pop %v589
        %v719 = vmul.f32 %v641, %v703
        %v720 = vmul.f32 %v644, %v704
        %v721 = vmul.f32 %v649, %v705
        %v722 = vmul.f32 %v652, %v706
        %v723 = vmul.f32 %v657, %v707
        %v724 = vmul.f32 %v660, %v708
        %v725 = vmul.f32 %v665, %v709
        %v726 = vmul.f32 %v668, %v710
        %v727 = vmul.f32 %v673, %v711
        %v728 = vmul.f32 %v676, %v712
        %v729 = vmul.f32 %v681, %v713
        %v730 = vmul.f32 %v684, %v714
        %v731 = vmul.f32 %v689, %v715
        %v732 = vmul.f32 %v692, %v716
        %v733 = vmul.f32 %v697, %v717
        %v734 = vmul.f32 %v700, %v718
        %vm735 = vcmask 523264
        %736 = vst.msk [vmem:[%s219] sm:$0xff] %vm735, %v719
        %737 = vst.msk [vmem:[%s219 + $0x8] sm:$0xff] %vm735, %v720
        %738 = vst.msk [vmem:[%s219 + $0x10] sm:$0xff] %vm735, %v721
        %739 = vst.msk [vmem:[%s219 + $0x18] sm:$0xff] %vm735, %v722
        %740 = vst.msk [vmem:[%s219 + $0x20] sm:$0xff] %vm735, %v723
        %741 = vst.msk [vmem:[%s219 + $0x28] sm:$0xff] %vm735, %v724
        %742 = vst.msk [vmem:[%s219 + $0x30] sm:$0xff] %vm735, %v725
        %743 = vst.msk [vmem:[%s219 + $0x38] sm:$0xff] %vm735, %v726
        %744 = vst.msk [vmem:[%s219 + $0x40] sm:$0xff] %vm735, %v727
        %745 = vst.msk [vmem:[%s219 + $0x48] sm:$0xff] %vm735, %v728
        %746 = vst.msk [vmem:[%s219 + $0x50] sm:$0xff] %vm735, %v729
        %747 = vst.msk [vmem:[%s219 + $0x58] sm:$0xff] %vm735, %v730
        %748 = vst.msk [vmem:[%s219 + $0x60] sm:$0xff] %vm735, %v731
        %749 = vst.msk [vmem:[%s219 + $0x68] sm:$0xff] %vm735, %v732
        %750 = vst.msk [vmem:[%s219 + $0x70] sm:$0xff] %vm735, %v733
        %751 = vst.msk [vmem:[%s219 + $0x78] sm:$0xff] %vm735, %v734
        %s752 = sadd.s32 %s320, 64
        %s753 = smul.addr %s752, 8
        %s754 = scalar_lea.vmem %s176, %s753 [#allocation2]
        %v755 = vld [vmem:[%s754] sm:$0xff]
        %v756 = vld [vmem:[%s754 + $0x8] sm:$0xff]
        %v757 = vld [vmem:[%s754 + $0x10] sm:$0xff]
        %v758 = vld [vmem:[%s754 + $0x18] sm:$0xff]
        %v759 = vld [vmem:[%s754 + $0x20] sm:$0xff]
        %v760 = vld [vmem:[%s754 + $0x28] sm:$0xff]
        %v761 = vld [vmem:[%s754 + $0x30] sm:$0xff]
        %v762 = vld [vmem:[%s754 + $0x38] sm:$0xff]
        %v763 = vld [vmem:[%s754 + $0x40] sm:$0xff]
        %v764 = vld [vmem:[%s754 + $0x48] sm:$0xff]
        %v765 = vld [vmem:[%s754 + $0x50] sm:$0xff]
        %v766 = vld [vmem:[%s754 + $0x58] sm:$0xff]
        %v767 = vld [vmem:[%s754 + $0x60] sm:$0xff]
        %v768 = vld [vmem:[%s754 + $0x68] sm:$0xff]
        %v769 = vld [vmem:[%s754 + $0x70] sm:$0xff]
        %v770 = vld [vmem:[%s754 + $0x78] sm:$0xff]
        %v771 = vld [vmem:[%s754 + $0x80] sm:$0xff]
        %v772 = vld [vmem:[%s754 + $0x88] sm:$0xff]
        %v773 = vld [vmem:[%s754 + $0x90] sm:$0xff]
        %v774 = vld [vmem:[%s754 + $0x98] sm:$0xff]
        %v775 = vld [vmem:[%s754 + $0xa0] sm:$0xff]
        %v776 = vld [vmem:[%s754 + $0xa8] sm:$0xff]
        %v777 = vld [vmem:[%s754 + $0xb0] sm:$0xff]
        %v778 = vld [vmem:[%s754 + $0xb8] sm:$0xff]
        %v779 = vld [vmem:[%s754 + $0xc0] sm:$0xff]
        %v780 = vld [vmem:[%s754 + $0xc8] sm:$0xff]
        %v781 = vld [vmem:[%s754 + $0xd0] sm:$0xff]
        %v782 = vld [vmem:[%s754 + $0xd8] sm:$0xff]
        %v783 = vld [vmem:[%s754 + $0xe0] sm:$0xff]
        %v784 = vld [vmem:[%s754 + $0xe8] sm:$0xff]
        %v785 = vld [vmem:[%s754 + $0xf0] sm:$0xff]
        %v786 = vld [vmem:[%s754 + $0xf8] sm:$0xff]
        %v787 = vadd.f32 %v755, %v359
        %v788 = vadd.f32 %v756, %v363
        %v789 = vadd.f32 %v757, %v359
        %v790 = vadd.f32 %v758, %v363
        %v791 = vadd.f32 %v759, %v359
        %v792 = vadd.f32 %v760, %v363
        %v793 = vadd.f32 %v761, %v359
        %v794 = vadd.f32 %v762, %v363
        %v795 = vadd.f32 %v763, %v359
        %v796 = vadd.f32 %v764, %v363
        %v797 = vadd.f32 %v765, %v359
        %v798 = vadd.f32 %v766, %v363
        %v799 = vadd.f32 %v767, %v359
        %v800 = vadd.f32 %v768, %v363
        %v801 = vadd.f32 %v769, %v359
        %v802 = vadd.f32 %v770, %v363
        %v803 = vadd.f32 %v771, %v359
        %v804 = vadd.f32 %v772, %v363
        %v805 = vadd.f32 %v773, %v359
        %v806 = vadd.f32 %v774, %v363
        %v807 = vadd.f32 %v775, %v359
        %v808 = vadd.f32 %v776, %v363
        %v809 = vadd.f32 %v777, %v359
        %v810 = vadd.f32 %v778, %v363
        %v811 = vadd.f32 %v779, %v359
        %v812 = vadd.f32 %v780, %v363
        %v813 = vadd.f32 %v781, %v359
        %v814 = vadd.f32 %v782, %v363
        %v815 = vadd.f32 %v783, %v359
        %v816 = vadd.f32 %v784, %v363
        %v817 = vadd.f32 %v785, %v359
        %v818 = vadd.f32 %v786, %v363
        %v819 = vmax.f32 %v787, %v788
        %820 = vmax.xlane.f32.xlu0 %v819
        %v821 = vpop.xlane.xlu0 %820
        %v822 = vmax.f32 %v789, %v790
        %823 = vmax.xlane.f32.xlu0 %v822
        %v824 = vpop.xlane.xlu0 %823
        %v825 = vmax.f32 %v791, %v792
        %826 = vmax.xlane.f32.xlu0 %v825
        %v827 = vpop.xlane.xlu0 %826
        %v828 = vmax.f32 %v793, %v794
        %829 = vmax.xlane.f32.xlu0 %v828
        %v830 = vpop.xlane.xlu0 %829
        %v831 = vmax.f32 %v795, %v796
        %832 = vmax.xlane.f32.xlu0 %v831
        %v833 = vpop.xlane.xlu0 %832
        %v834 = vmax.f32 %v797, %v798
        %835 = vmax.xlane.f32.xlu0 %v834
        %v836 = vpop.xlane.xlu0 %835
        %v837 = vmax.f32 %v799, %v800
        %838 = vmax.xlane.f32.xlu0 %v837
        %v839 = vpop.xlane.xlu0 %838
        %v840 = vmax.f32 %v801, %v802
        %841 = vmax.xlane.f32.xlu0 %v840
        %v842 = vpop.xlane.xlu0 %841
        %v843 = vmax.f32 %v803, %v804
        %844 = vmax.xlane.f32.xlu0 %v843
        %v845 = vpop.xlane.xlu0 %844
        %v846 = vmax.f32 %v805, %v806
        %847 = vmax.xlane.f32.xlu0 %v846
        %v848 = vpop.xlane.xlu0 %847
        %v849 = vmax.f32 %v807, %v808
        %850 = vmax.xlane.f32.xlu0 %v849
        %v851 = vpop.xlane.xlu0 %850
        %v852 = vmax.f32 %v809, %v810
        %853 = vmax.xlane.f32.xlu0 %v852
        %v854 = vpop.xlane.xlu0 %853
        %v855 = vmax.f32 %v811, %v812
        %856 = vmax.xlane.f32.xlu0 %v855
        %v857 = vpop.xlane.xlu0 %856
        %v858 = vmax.f32 %v813, %v814
        %859 = vmax.xlane.f32.xlu0 %v858
        %v860 = vpop.xlane.xlu0 %859
        %v861 = vmax.f32 %v815, %v816
        %862 = vmax.xlane.f32.xlu0 %v861
        %v863 = vpop.xlane.xlu0 %862
        %v864 = vmax.f32 %v817, %v818
        %865 = vmax.xlane.f32.xlu0 %v864
        %v866 = vpop.xlane.xlu0 %865
        %v867 = vsub.f32 %v787, %v821
        %v868 = vsub.f32 %v788, %v821
        %v869 = vsub.f32 %v789, %v824
        %v870 = vsub.f32 %v790, %v824
        %v871 = vsub.f32 %v791, %v827
        %v872 = vsub.f32 %v792, %v827
        %v873 = vsub.f32 %v793, %v830
        %v874 = vsub.f32 %v794, %v830
        %v875 = vsub.f32 %v795, %v833
        %v876 = vsub.f32 %v796, %v833
        %v877 = vsub.f32 %v797, %v836
        %v878 = vsub.f32 %v798, %v836
        %v879 = vsub.f32 %v799, %v839
        %v880 = vsub.f32 %v800, %v839
        %v881 = vsub.f32 %v801, %v842
        %v882 = vsub.f32 %v802, %v842
        %v883 = vsub.f32 %v803, %v845
        %v884 = vsub.f32 %v804, %v845
        %v885 = vsub.f32 %v805, %v848
        %v886 = vsub.f32 %v806, %v848
        %v887 = vsub.f32 %v807, %v851
        %v888 = vsub.f32 %v808, %v851
        %v889 = vsub.f32 %v809, %v854
        %v890 = vsub.f32 %v810, %v854
        %v891 = vsub.f32 %v811, %v857
        %v892 = vsub.f32 %v812, %v857
        %v893 = vsub.f32 %v813, %v860
        %v894 = vsub.f32 %v814, %v860
        %v895 = vsub.f32 %v815, %v863
        %v896 = vsub.f32 %v816, %v863
        %v897 = vsub.f32 %v817, %v866
        %v898 = vsub.f32 %v818, %v866
        %v899 = vmul.f32 %v867, 1.442695
        %v900 = vpow.pop %v899
        %v901 = vmul.f32 %v868, 1.442695
        %v902 = vpow.pop %v901
        %v903 = vmul.f32 %v869, 1.442695
        %v904 = vpow.pop %v903
        %v905 = vmul.f32 %v870, 1.442695
        %v906 = vpow.pop %v905
        %v907 = vmul.f32 %v871, 1.442695
        %v908 = vpow.pop %v907
        %v909 = vmul.f32 %v872, 1.442695
        %v910 = vpow.pop %v909
        %v911 = vmul.f32 %v873, 1.442695
        %v912 = vpow.pop %v911
        %v913 = vmul.f32 %v874, 1.442695
        %v914 = vpow.pop %v913
        %v915 = vmul.f32 %v875, 1.442695
        %v916 = vpow.pop %v915
        %v917 = vmul.f32 %v876, 1.442695
        %v918 = vpow.pop %v917
        %v919 = vmul.f32 %v877, 1.442695
        %v920 = vpow.pop %v919
        %v921 = vmul.f32 %v878, 1.442695
        %v922 = vpow.pop %v921
        %v923 = vmul.f32 %v879, 1.442695
        %v924 = vpow.pop %v923
        %v925 = vmul.f32 %v880, 1.442695
        %v926 = vpow.pop %v925
        %v927 = vmul.f32 %v881, 1.442695
        %v928 = vpow.pop %v927
        %v929 = vmul.f32 %v882, 1.442695
        %v930 = vpow.pop %v929
        %v931 = vmul.f32 %v883, 1.442695
        %v932 = vpow.pop %v931
        %v933 = vmul.f32 %v884, 1.442695
        %v934 = vpow.pop %v933
        %v935 = vmul.f32 %v885, 1.442695
        %v936 = vpow.pop %v935
        %v937 = vmul.f32 %v886, 1.442695
        %v938 = vpow.pop %v937
        %v939 = vmul.f32 %v887, 1.442695
        %v940 = vpow.pop %v939
        %v941 = vmul.f32 %v888, 1.442695
        %v942 = vpow.pop %v941
        %v943 = vmul.f32 %v889, 1.442695
        %v944 = vpow.pop %v943
        %v945 = vmul.f32 %v890, 1.442695
        %v946 = vpow.pop %v945
        %v947 = vmul.f32 %v891, 1.442695
        %v948 = vpow.pop %v947
        %v949 = vmul.f32 %v892, 1.442695
        %v950 = vpow.pop %v949
        %v951 = vmul.f32 %v893, 1.442695
        %v952 = vpow.pop %v951
        %v953 = vmul.f32 %v894, 1.442695
        %v954 = vpow.pop %v953
        %v955 = vmul.f32 %v895, 1.442695
        %v956 = vpow.pop %v955
        %v957 = vmul.f32 %v896, 1.442695
        %v958 = vpow.pop %v957
        %v959 = vmul.f32 %v897, 1.442695
        %v960 = vpow.pop %v959
        %v961 = vmul.f32 %v898, 1.442695
        %v962 = vpow.pop %v961
        %v963 = vadd.f32 %v900, %v902
        %964 = vadd.xlane.f32.xlu0 %v963
        %v965 = vpop.xlane.xlu0 %964
        %v966 = vadd.f32 %v904, %v906
        %967 = vadd.xlane.f32.xlu0 %v966
        %v968 = vpop.xlane.xlu0 %967
        %v969 = vadd.f32 %v908, %v910
        %970 = vadd.xlane.f32.xlu0 %v969
        %v971 = vpop.xlane.xlu0 %970
        %v972 = vadd.f32 %v912, %v914
        %973 = vadd.xlane.f32.xlu0 %v972
        %v974 = vpop.xlane.xlu0 %973
        %v975 = vadd.f32 %v916, %v918
        %976 = vadd.xlane.f32.xlu0 %v975
        %v977 = vpop.xlane.xlu0 %976
        %v978 = vadd.f32 %v920, %v922
        %979 = vadd.xlane.f32.xlu0 %v978
        %v980 = vpop.xlane.xlu0 %979
        %v981 = vadd.f32 %v924, %v926
        %982 = vadd.xlane.f32.xlu0 %v981
        %v983 = vpop.xlane.xlu0 %982
        %v984 = vadd.f32 %v928, %v930
        %985 = vadd.xlane.f32.xlu0 %v984
        %v986 = vpop.xlane.xlu0 %985
        %v987 = vadd.f32 %v932, %v934
        %988 = vadd.xlane.f32.xlu0 %v987
        %v989 = vpop.xlane.xlu0 %988
        %v990 = vadd.f32 %v936, %v938
        %991 = vadd.xlane.f32.xlu0 %v990
        %v992 = vpop.xlane.xlu0 %991
        %v993 = vadd.f32 %v940, %v942
        %994 = vadd.xlane.f32.xlu0 %v993
        %v995 = vpop.xlane.xlu0 %994
        %v996 = vadd.f32 %v944, %v946
        %997 = vadd.xlane.f32.xlu0 %v996
        %v998 = vpop.xlane.xlu0 %997
        %v999 = vadd.f32 %v948, %v950
        %1000 = vadd.xlane.f32.xlu0 %v999
        %v1001 = vpop.xlane.xlu0 %1000
        %v1002 = vadd.f32 %v952, %v954
        %1003 = vadd.xlane.f32.xlu0 %v1002
        %v1004 = vpop.xlane.xlu0 %1003
        %v1005 = vadd.f32 %v956, %v958
        %1006 = vadd.xlane.f32.xlu0 %v1005
        %v1007 = vpop.xlane.xlu0 %1006
        %v1008 = vadd.f32 %v960, %v962
        %1009 = vadd.xlane.f32.xlu0 %v1008
        %v1010 = vpop.xlane.xlu0 %1009
        %v1011 = vpack.c.bf16 %v904, %v900
        %v1012 = vpack.c.bf16 %v906, %v902
        %v1013 = vpack.c.bf16 %v912, %v908
        %v1014 = vpack.c.bf16 %v914, %v910
        %v1015 = vpack.c.bf16 %v920, %v916
        %v1016 = vpack.c.bf16 %v922, %v918
        %v1017 = vpack.c.bf16 %v928, %v924
        %v1018 = vpack.c.bf16 %v930, %v926
        %v1019 = vpack.c.bf16 %v936, %v932
        %v1020 = vpack.c.bf16 %v938, %v934
        %v1021 = vpack.c.bf16 %v944, %v940
        %v1022 = vpack.c.bf16 %v946, %v942
        %v1023 = vpack.c.bf16 %v952, %v948
        %v1024 = vpack.c.bf16 %v954, %v950
        %v1025 = vpack.c.bf16 %v960, %v956
        %v1026 = vpack.c.bf16 %v962, %v958
        %1027 = vmatprep.subr.bf16.mxu0 0
        %1028 = vmatpush1.bf16.msra.mxu0 %v311
        %1029 = vmatprep.subr.bf16.mxu0 0
        %1030 = vmatpush1.bf16.msra.mxu0 %v310
        %1031 = vmatprep.subr.bf16.mxu0 0
        %1032 = vmatpush1.bf16.msra.mxu0 %v309
        %1033 = vmatprep.subr.bf16.mxu0 0
        %1034 = vmatpush1.bf16.msra.mxu0 %v308
        %1035 = vmatprep.subr.bf16.mxu0 0
        %1036 = vmatpush1.bf16.msra.mxu0 %v307
        %1037 = vmatprep.subr.bf16.mxu0 0
        %1038 = vmatpush1.bf16.msra.mxu0 %v306
        %1039 = vmatprep.subr.bf16.mxu0 0
        %1040 = vmatpush1.bf16.msra.mxu0 %v305
        %1041 = vmatprep.subr.bf16.mxu0 0
        %1042 = vmatpush1.bf16.msra.mxu0 %v304
        %1043 = vmatprep.subr.bf16.mxu0 0
        %1044 = vmatpush2.bf16.msra.mxu0 %v319
        %1045 = vmatprep.subr.bf16.mxu0 0
        %1046 = vmatpush2.bf16.msra.mxu0 %v318
        %1047 = vmatprep.subr.bf16.mxu0 0
        %1048 = vmatpush2.bf16.msra.mxu0 %v317
        %1049 = vmatprep.subr.bf16.mxu0 0
        %1050 = vmatpush2.bf16.msra.mxu0 %v316
        %1051 = vmatprep.subr.bf16.mxu0 0
        %1052 = vmatpush2.bf16.msra.mxu0 %v315
        %1053 = vmatprep.subr.bf16.mxu0 0
        %1054 = vmatpush2.bf16.msra.mxu0 %v314
        %1055 = vmatprep.subr.bf16.mxu0 0
        %1056 = vmatpush2.bf16.msra.mxu0 %v313
        %1057 = vmatprep.subr.bf16.mxu0 0
        %1058 = vmatpush2.bf16.msra.mxu0 %v312
        %1059 = vmatprep.mubr.bf16.mxu0 %v1012
        %1060 = vmatmul.mubr.bf16.gmra.mxu0 %v1011
        %v1061 = vpop.f32.mrf.mxu0
        %v1062 = vadd.f32 0.0, %v1061
        %v1063 = vpop.f32.mrf.mxu0
        %v1064 = vpop.f32.mrf.mxu0
        %v1065 = vadd.f32 0.0, %v1064
        %v1066 = vpop.f32.mrf.mxu0
        %1067 = vmatprep.mubr.bf16.mxu0 %v1014
        %1068 = vmatmul.mubr.bf16.gmra.mxu0 %v1013
        %v1069 = vpop.f32.mrf.mxu0
        %v1070 = vadd.f32 0.0, %v1069
        %v1071 = vpop.f32.mrf.mxu0
        %v1072 = vpop.f32.mrf.mxu0
        %v1073 = vadd.f32 0.0, %v1072
        %v1074 = vpop.f32.mrf.mxu0
        %1075 = vmatprep.mubr.bf16.mxu0 %v1016
        %1076 = vmatmul.mubr.bf16.gmra.mxu0 %v1015
        %v1077 = vpop.f32.mrf.mxu0
        %v1078 = vadd.f32 0.0, %v1077
        %v1079 = vpop.f32.mrf.mxu0
        %v1080 = vpop.f32.mrf.mxu0
        %v1081 = vadd.f32 0.0, %v1080
        %v1082 = vpop.f32.mrf.mxu0
        %1083 = vmatprep.mubr.bf16.mxu0 %v1018
        %1084 = vmatmul.mubr.bf16.gmra.mxu0 %v1017
        %v1085 = vpop.f32.mrf.mxu0
        %v1086 = vadd.f32 0.0, %v1085
        %v1087 = vpop.f32.mrf.mxu0
        %v1088 = vpop.f32.mrf.mxu0
        %v1089 = vadd.f32 0.0, %v1088
        %v1090 = vpop.f32.mrf.mxu0
        %1091 = vmatprep.mubr.bf16.mxu0 %v1020
        %1092 = vmatmul.mubr.bf16.gmra.mxu0 %v1019
        %v1093 = vpop.f32.mrf.mxu0
        %v1094 = vadd.f32 0.0, %v1093
        %v1095 = vpop.f32.mrf.mxu0
        %v1096 = vpop.f32.mrf.mxu0
        %v1097 = vadd.f32 0.0, %v1096
        %v1098 = vpop.f32.mrf.mxu0
        %1099 = vmatprep.mubr.bf16.mxu0 %v1022
        %1100 = vmatmul.mubr.bf16.gmra.mxu0 %v1021
        %v1101 = vpop.f32.mrf.mxu0
        %v1102 = vadd.f32 0.0, %v1101
        %v1103 = vpop.f32.mrf.mxu0
        %v1104 = vpop.f32.mrf.mxu0
        %v1105 = vadd.f32 0.0, %v1104
        %v1106 = vpop.f32.mrf.mxu0
        %1107 = vmatprep.mubr.bf16.mxu0 %v1024
        %1108 = vmatmul.mubr.bf16.gmra.mxu0 %v1023
        %v1109 = vpop.f32.mrf.mxu0
        %v1110 = vadd.f32 0.0, %v1109
        %v1111 = vpop.f32.mrf.mxu0
        %v1112 = vpop.f32.mrf.mxu0
        %v1113 = vadd.f32 0.0, %v1112
        %v1114 = vpop.f32.mrf.mxu0
        %1115 = vmatprep.mubr.bf16.mxu0 %v1026
        %1116 = vmatmul.mubr.bf16.gmra.mxu0 %v1025
        %v1117 = vpop.f32.mrf.mxu0
        %v1118 = vadd.f32 0.0, %v1117
        %v1119 = vpop.f32.mrf.mxu0
        %v1120 = vpop.f32.mrf.mxu0
        %v1121 = vadd.f32 0.0, %v1120
        %v1122 = vpop.f32.mrf.mxu0
        %1123 = vdwg.mxu0
        %v1124 = vrcp.pop %v965
        %v1125 = vrcp.pop %v968
        %v1126 = vrcp.pop %v971
        %v1127 = vrcp.pop %v974
        %v1128 = vrcp.pop %v977
        %v1129 = vrcp.pop %v980
        %v1130 = vrcp.pop %v983
        %v1131 = vrcp.pop %v986
        %v1132 = vrcp.pop %v989
        %v1133 = vrcp.pop %v992
        %v1134 = vrcp.pop %v995
        %v1135 = vrcp.pop %v998
        %v1136 = vrcp.pop %v1001
        %v1137 = vrcp.pop %v1004
        %v1138 = vrcp.pop %v1007
        %v1139 = vrcp.pop %v1010
        %v1140 = vmul.f32 %v1062, %v1124
        %v1141 = vmul.f32 %v1065, %v1125
        %v1142 = vmul.f32 %v1070, %v1126
        %v1143 = vmul.f32 %v1073, %v1127
        %v1144 = vmul.f32 %v1078, %v1128
        %v1145 = vmul.f32 %v1081, %v1129
        %v1146 = vmul.f32 %v1086, %v1130
        %v1147 = vmul.f32 %v1089, %v1131
        %v1148 = vmul.f32 %v1094, %v1132
        %v1149 = vmul.f32 %v1097, %v1133
        %v1150 = vmul.f32 %v1102, %v1134
        %v1151 = vmul.f32 %v1105, %v1135
        %v1152 = vmul.f32 %v1110, %v1136
        %v1153 = vmul.f32 %v1113, %v1137
        %v1154 = vmul.f32 %v1118, %v1138
        %v1155 = vmul.f32 %v1121, %v1139
        %s1156 = sadd.s32 0, 256
        %s1157 = scalar_lea.vmem %s219, %s1156
        %1158 = vst.msk [vmem:[%s1157] sm:$0xff] %vm735, %v1140
        %1159 = vst.msk [vmem:[%s1157 + $0x8] sm:$0xff] %vm735, %v1141
        %1160 = vst.msk [vmem:[%s1157 + $0x10] sm:$0xff] %vm735, %v1142
        %1161 = vst.msk [vmem:[%s1157 + $0x18] sm:$0xff] %vm735, %v1143
        %1162 = vst.msk [vmem:[%s1157 + $0x20] sm:$0xff] %vm735, %v1144
        %1163 = vst.msk [vmem:[%s1157 + $0x28] sm:$0xff] %vm735, %v1145
        %1164 = vst.msk [vmem:[%s1157 + $0x30] sm:$0xff] %vm735, %v1146
        %1165 = vst.msk [vmem:[%s1157 + $0x38] sm:$0xff] %vm735, %v1147
        %1166 = vst.msk [vmem:[%s1157 + $0x40] sm:$0xff] %vm735, %v1148
        %1167 = vst.msk [vmem:[%s1157 + $0x48] sm:$0xff] %vm735, %v1149
        %1168 = vst.msk [vmem:[%s1157 + $0x50] sm:$0xff] %vm735, %v1150
        %1169 = vst.msk [vmem:[%s1157 + $0x58] sm:$0xff] %vm735, %v1151
        %1170 = vst.msk [vmem:[%s1157 + $0x60] sm:$0xff] %vm735, %v1152
        %1171 = vst.msk [vmem:[%s1157 + $0x68] sm:$0xff] %vm735, %v1153
        %1172 = vst.msk [vmem:[%s1157 + $0x70] sm:$0xff] %vm735, %v1154
        %1173 = vst.msk [vmem:[%s1157 + $0x78] sm:$0xff] %vm735, %v1155
        %s1174 = smul.u32 16, 2
        %s1175 = smul.addr %s1174, 8
        %s1176 = scalar_lea.vmem %s176, %s1175 [#allocation2]
        %v1177 = vld [vmem:[%s1176] sm:$0xff]
        %v1178 = vld [vmem:[%s1176 + $0x8] sm:$0xff]
        %v1179 = vld [vmem:[%s1176 + $0x10] sm:$0xff]
        %v1180 = vld [vmem:[%s1176 + $0x18] sm:$0xff]
        %v1181 = vld [vmem:[%s1176 + $0x20] sm:$0xff]
        %v1182 = vld [vmem:[%s1176 + $0x28] sm:$0xff]
        %v1183 = vld [vmem:[%s1176 + $0x30] sm:$0xff]
        %v1184 = vld [vmem:[%s1176 + $0x38] sm:$0xff]
        %v1185 = vld [vmem:[%s1176 + $0x40] sm:$0xff]
        %v1186 = vld [vmem:[%s1176 + $0x48] sm:$0xff]
        %v1187 = vld [vmem:[%s1176 + $0x50] sm:$0xff]
        %v1188 = vld [vmem:[%s1176 + $0x58] sm:$0xff]
        %v1189 = vld [vmem:[%s1176 + $0x60] sm:$0xff]
        %v1190 = vld [vmem:[%s1176 + $0x68] sm:$0xff]
        %v1191 = vld [vmem:[%s1176 + $0x70] sm:$0xff]
        %v1192 = vld [vmem:[%s1176 + $0x78] sm:$0xff]
        %v1193 = vld [vmem:[%s1176 + $0x80] sm:$0xff]
        %v1194 = vld [vmem:[%s1176 + $0x88] sm:$0xff]
        %v1195 = vld [vmem:[%s1176 + $0x90] sm:$0xff]
        %v1196 = vld [vmem:[%s1176 + $0x98] sm:$0xff]
        %v1197 = vld [vmem:[%s1176 + $0xa0] sm:$0xff]
        %v1198 = vld [vmem:[%s1176 + $0xa8] sm:$0xff]
        %v1199 = vld [vmem:[%s1176 + $0xb0] sm:$0xff]
        %v1200 = vld [vmem:[%s1176 + $0xb8] sm:$0xff]
        %v1201 = vld [vmem:[%s1176 + $0xc0] sm:$0xff]
        %v1202 = vld [vmem:[%s1176 + $0xc8] sm:$0xff]
        %v1203 = vld [vmem:[%s1176 + $0xd0] sm:$0xff]
        %v1204 = vld [vmem:[%s1176 + $0xd8] sm:$0xff]
        %v1205 = vld [vmem:[%s1176 + $0xe0] sm:$0xff]
        %v1206 = vld [vmem:[%s1176 + $0xe8] sm:$0xff]
        %v1207 = vld [vmem:[%s1176 + $0xf0] sm:$0xff]
        %v1208 = vld [vmem:[%s1176 + $0xf8] sm:$0xff]
        %v1209 = vadd.f32 %v1177, %v359
        %v1210 = vadd.f32 %v1178, %v363
        %v1211 = vadd.f32 %v1179, %v359
        %v1212 = vadd.f32 %v1180, %v363
        %v1213 = vadd.f32 %v1181, %v359
        %v1214 = vadd.f32 %v1182, %v363
        %v1215 = vadd.f32 %v1183, %v359
        %v1216 = vadd.f32 %v1184, %v363
        %v1217 = vadd.f32 %v1185, %v359
        %v1218 = vadd.f32 %v1186, %v363
        %v1219 = vadd.f32 %v1187, %v359
        %v1220 = vadd.f32 %v1188, %v363
        %v1221 = vadd.f32 %v1189, %v359
        %v1222 = vadd.f32 %v1190, %v363
        %v1223 = vadd.f32 %v1191, %v359
        %v1224 = vadd.f32 %v1192, %v363
        %v1225 = vadd.f32 %v1193, %v359
        %v1226 = vadd.f32 %v1194, %v363
        %v1227 = vadd.f32 %v1195, %v359
        %v1228 = vadd.f32 %v1196, %v363
        %v1229 = vadd.f32 %v1197, %v359
        %v1230 = vadd.f32 %v1198, %v363
        %v1231 = vadd.f32 %v1199, %v359
        %v1232 = vadd.f32 %v1200, %v363
        %v1233 = vadd.f32 %v1201, %v359
        %v1234 = vadd.f32 %v1202, %v363
        %v1235 = vadd.f32 %v1203, %v359
        %v1236 = vadd.f32 %v1204, %v363
        %v1237 = vadd.f32 %v1205, %v359
        %v1238 = vadd.f32 %v1206, %v363
        %v1239 = vadd.f32 %v1207, %v359
        %v1240 = vadd.f32 %v1208, %v363
        %v1241 = vmax.f32 %v1209, %v1210
        %1242 = vmax.xlane.f32.xlu0 %v1241
        %v1243 = vpop.xlane.xlu0 %1242
        %v1244 = vmax.f32 %v1211, %v1212
        %1245 = vmax.xlane.f32.xlu0 %v1244
        %v1246 = vpop.xlane.xlu0 %1245
        %v1247 = vmax.f32 %v1213, %v1214
        %1248 = vmax.xlane.f32.xlu0 %v1247
        %v1249 = vpop.xlane.xlu0 %1248
        %v1250 = vmax.f32 %v1215, %v1216
        %1251 = vmax.xlane.f32.xlu0 %v1250
        %v1252 = vpop.xlane.xlu0 %1251
        %v1253 = vmax.f32 %v1217, %v1218
        %1254 = vmax.xlane.f32.xlu0 %v1253
        %v1255 = vpop.xlane.xlu0 %1254
        %v1256 = vmax.f32 %v1219, %v1220
        %1257 = vmax.xlane.f32.xlu0 %v1256
        %v1258 = vpop.xlane.xlu0 %1257
        %v1259 = vmax.f32 %v1221, %v1222
        %1260 = vmax.xlane.f32.xlu0 %v1259
        %v1261 = vpop.xlane.xlu0 %1260
        %v1262 = vmax.f32 %v1223, %v1224
        %1263 = vmax.xlane.f32.xlu0 %v1262
        %v1264 = vpop.xlane.xlu0 %1263
        %v1265 = vmax.f32 %v1225, %v1226
        %1266 = vmax.xlane.f32.xlu0 %v1265
        %v1267 = vpop.xlane.xlu0 %1266
        %v1268 = vmax.f32 %v1227, %v1228
        %1269 = vmax.xlane.f32.xlu0 %v1268
        %v1270 = vpop.xlane.xlu0 %1269
        %v1271 = vmax.f32 %v1229, %v1230
        %1272 = vmax.xlane.f32.xlu0 %v1271
        %v1273 = vpop.xlane.xlu0 %1272
        %v1274 = vmax.f32 %v1231, %v1232
        %1275 = vmax.xlane.f32.xlu0 %v1274
        %v1276 = vpop.xlane.xlu0 %1275
        %v1277 = vmax.f32 %v1233, %v1234
        %1278 = vmax.xlane.f32.xlu0 %v1277
        %v1279 = vpop.xlane.xlu0 %1278
        %v1280 = vmax.f32 %v1235, %v1236
        %1281 = vmax.xlane.f32.xlu0 %v1280
        %v1282 = vpop.xlane.xlu0 %1281
        %v1283 = vmax.f32 %v1237, %v1238
        %1284 = vmax.xlane.f32.xlu0 %v1283
        %v1285 = vpop.xlane.xlu0 %1284
        %v1286 = vmax.f32 %v1239, %v1240
        %1287 = vmax.xlane.f32.xlu0 %v1286
        %v1288 = vpop.xlane.xlu0 %1287
        %v1289 = vsub.f32 %v1209, %v1243
        %v1290 = vsub.f32 %v1210, %v1243
        %v1291 = vsub.f32 %v1211, %v1246
        %v1292 = vsub.f32 %v1212, %v1246
        %v1293 = vsub.f32 %v1213, %v1249
        %v1294 = vsub.f32 %v1214, %v1249
        %v1295 = vsub.f32 %v1215, %v1252
        %v1296 = vsub.f32 %v1216, %v1252
        %v1297 = vsub.f32 %v1217, %v1255
        %v1298 = vsub.f32 %v1218, %v1255
        %v1299 = vsub.f32 %v1219, %v1258
        %v1300 = vsub.f32 %v1220, %v1258
        %v1301 = vsub.f32 %v1221, %v1261
        %v1302 = vsub.f32 %v1222, %v1261
        %v1303 = vsub.f32 %v1223, %v1264
        %v1304 = vsub.f32 %v1224, %v1264
        %v1305 = vsub.f32 %v1225, %v1267
        %v1306 = vsub.f32 %v1226, %v1267
        %v1307 = vsub.f32 %v1227, %v1270
        %v1308 = vsub.f32 %v1228, %v1270
        %v1309 = vsub.f32 %v1229, %v1273
        %v1310 = vsub.f32 %v1230, %v1273
        %v1311 = vsub.f32 %v1231, %v1276
        %v1312 = vsub.f32 %v1232, %v1276
        %v1313 = vsub.f32 %v1233, %v1279
        %v1314 = vsub.f32 %v1234, %v1279
        %v1315 = vsub.f32 %v1235, %v1282
        %v1316 = vsub.f32 %v1236, %v1282
        %v1317 = vsub.f32 %v1237, %v1285
        %v1318 = vsub.f32 %v1238, %v1285
        %v1319 = vsub.f32 %v1239, %v1288
        %v1320 = vsub.f32 %v1240, %v1288
        %v1321 = vmul.f32 %v1289, 1.442695
        %v1322 = vpow.pop %v1321
        %v1323 = vmul.f32 %v1290, 1.442695
        %v1324 = vpow.pop %v1323
        %v1325 = vmul.f32 %v1291, 1.442695
        %v1326 = vpow.pop %v1325
        %v1327 = vmul.f32 %v1292, 1.442695
        %v1328 = vpow.pop %v1327
        %v1329 = vmul.f32 %v1293, 1.442695
        %v1330 = vpow.pop %v1329
        %v1331 = vmul.f32 %v1294, 1.442695
        %v1332 = vpow.pop %v1331
        %v1333 = vmul.f32 %v1295, 1.442695
        %v1334 = vpow.pop %v1333
        %v1335 = vmul.f32 %v1296, 1.442695
        %v1336 = vpow.pop %v1335
        %v1337 = vmul.f32 %v1297, 1.442695
        %v1338 = vpow.pop %v1337
        %v1339 = vmul.f32 %v1298, 1.442695
        %v1340 = vpow.pop %v1339
        %v1341 = vmul.f32 %v1299, 1.442695
        %v1342 = vpow.pop %v1341
        %v1343 = vmul.f32 %v1300, 1.442695
        %v1344 = vpow.pop %v1343
        %v1345 = vmul.f32 %v1301, 1.442695
        %v1346 = vpow.pop %v1345
        %v1347 = vmul.f32 %v1302, 1.442695
        %v1348 = vpow.pop %v1347
        %v1349 = vmul.f32 %v1303, 1.442695
        %v1350 = vpow.pop %v1349
        %v1351 = vmul.f32 %v1304, 1.442695
        %v1352 = vpow.pop %v1351
        %v1353 = vmul.f32 %v1305, 1.442695
        %v1354 = vpow.pop %v1353
        %v1355 = vmul.f32 %v1306, 1.442695
        %v1356 = vpow.pop %v1355
        %v1357 = vmul.f32 %v1307, 1.442695
        %v1358 = vpow.pop %v1357
        %v1359 = vmul.f32 %v1308, 1.442695
        %v1360 = vpow.pop %v1359
        %v1361 = vmul.f32 %v1309, 1.442695
        %v1362 = vpow.pop %v1361
        %v1363 = vmul.f32 %v1310, 1.442695
        %v1364 = vpow.pop %v1363
        %v1365 = vmul.f32 %v1311, 1.442695
        %v1366 = vpow.pop %v1365
        %v1367 = vmul.f32 %v1312, 1.442695
        %v1368 = vpow.pop %v1367
        %v1369 = vmul.f32 %v1313, 1.442695
        %v1370 = vpow.pop %v1369
        %v1371 = vmul.f32 %v1314, 1.442695
        %v1372 = vpow.pop %v1371
        %v1373 = vmul.f32 %v1315, 1.442695
        %v1374 = vpow.pop %v1373
        %v1375 = vmul.f32 %v1316, 1.442695
        %v1376 = vpow.pop %v1375
        %v1377 = vmul.f32 %v1317, 1.442695
        %v1378 = vpow.pop %v1377
        %v1379 = vmul.f32 %v1318, 1.442695
        %v1380 = vpow.pop %v1379
        %v1381 = vmul.f32 %v1319, 1.442695
        %v1382 = vpow.pop %v1381
        %v1383 = vmul.f32 %v1320, 1.442695
        %v1384 = vpow.pop %v1383
        %v1385 = vadd.f32 %v1322, %v1324
        %1386 = vadd.xlane.f32.xlu0 %v1385
        %v1387 = vpop.xlane.xlu0 %1386
        %v1388 = vadd.f32 %v1326, %v1328
        %1389 = vadd.xlane.f32.xlu0 %v1388
        %v1390 = vpop.xlane.xlu0 %1389
        %v1391 = vadd.f32 %v1330, %v1332
        %1392 = vadd.xlane.f32.xlu0 %v1391
        %v1393 = vpop.xlane.xlu0 %1392
        %v1394 = vadd.f32 %v1334, %v1336
        %1395 = vadd.xlane.f32.xlu0 %v1394
        %v1396 = vpop.xlane.xlu0 %1395
        %v1397 = vadd.f32 %v1338, %v1340
        %1398 = vadd.xlane.f32.xlu0 %v1397
        %v1399 = vpop.xlane.xlu0 %1398
        %v1400 = vadd.f32 %v1342, %v1344
        %1401 = vadd.xlane.f32.xlu0 %v1400
        %v1402 = vpop.xlane.xlu0 %1401
        %v1403 = vadd.f32 %v1346, %v1348
        %1404 = vadd.xlane.f32.xlu0 %v1403
        %v1405 = vpop.xlane.xlu0 %1404
        %v1406 = vadd.f32 %v1350, %v1352
        %1407 = vadd.xlane.f32.xlu0 %v1406
        %v1408 = vpop.xlane.xlu0 %1407
        %v1409 = vadd.f32 %v1354, %v1356
        %1410 = vadd.xlane.f32.xlu0 %v1409
        %v1411 = vpop.xlane.xlu0 %1410
        %v1412 = vadd.f32 %v1358, %v1360
        %1413 = vadd.xlane.f32.xlu0 %v1412
        %v1414 = vpop.xlane.xlu0 %1413
        %v1415 = vadd.f32 %v1362, %v1364
        %1416 = vadd.xlane.f32.xlu0 %v1415
        %v1417 = vpop.xlane.xlu0 %1416
        %v1418 = vadd.f32 %v1366, %v1368
        %1419 = vadd.xlane.f32.xlu0 %v1418
        %v1420 = vpop.xlane.xlu0 %1419
        %v1421 = vadd.f32 %v1370, %v1372
        %1422 = vadd.xlane.f32.xlu0 %v1421
        %v1423 = vpop.xlane.xlu0 %1422
        %v1424 = vadd.f32 %v1374, %v1376
        %1425 = vadd.xlane.f32.xlu0 %v1424
        %v1426 = vpop.xlane.xlu0 %1425
        %v1427 = vadd.f32 %v1378, %v1380
        %1428 = vadd.xlane.f32.xlu0 %v1427
        %v1429 = vpop.xlane.xlu0 %1428
        %v1430 = vadd.f32 %v1382, %v1384
        %1431 = vadd.xlane.f32.xlu0 %v1430
        %v1432 = vpop.xlane.xlu0 %1431
        %v1433 = vpack.c.bf16 %v1326, %v1322
        %v1434 = vpack.c.bf16 %v1328, %v1324
        %v1435 = vpack.c.bf16 %v1334, %v1330
        %v1436 = vpack.c.bf16 %v1336, %v1332
        %v1437 = vpack.c.bf16 %v1342, %v1338
        %v1438 = vpack.c.bf16 %v1344, %v1340
        %v1439 = vpack.c.bf16 %v1350, %v1346
        %v1440 = vpack.c.bf16 %v1352, %v1348
        %v1441 = vpack.c.bf16 %v1358, %v1354
        %v1442 = vpack.c.bf16 %v1360, %v1356
        %v1443 = vpack.c.bf16 %v1366, %v1362
        %v1444 = vpack.c.bf16 %v1368, %v1364
        %v1445 = vpack.c.bf16 %v1374, %v1370
        %v1446 = vpack.c.bf16 %v1376, %v1372
        %v1447 = vpack.c.bf16 %v1382, %v1378
        %v1448 = vpack.c.bf16 %v1384, %v1380
        %1449 = vmatprep.subr.bf16.mxu0 0
        %1450 = vmatpush1.bf16.msra.mxu0 %v262
        %1451 = vmatprep.subr.bf16.mxu0 0
        %1452 = vmatpush1.bf16.msra.mxu0 %v261
        %1453 = vmatprep.subr.bf16.mxu0 0
        %1454 = vmatpush1.bf16.msra.mxu0 %v260
        %1455 = vmatprep.subr.bf16.mxu0 0
        %1456 = vmatpush1.bf16.msra.mxu0 %v259
        %1457 = vmatprep.subr.bf16.mxu0 0
        %1458 = vmatpush1.bf16.msra.mxu0 %v258
        %1459 = vmatprep.subr.bf16.mxu0 0
        %1460 = vmatpush1.bf16.msra.mxu0 %v257
        %1461 = vmatprep.subr.bf16.mxu0 0
        %1462 = vmatpush1.bf16.msra.mxu0 %v256
        %1463 = vmatprep.subr.bf16.mxu0 0
        %1464 = vmatpush1.bf16.msra.mxu0 %v255
        %1465 = vmatprep.subr.bf16.mxu0 0
        %1466 = vmatpush2.bf16.msra.mxu0 %v270
        %1467 = vmatprep.subr.bf16.mxu0 0
        %1468 = vmatpush2.bf16.msra.mxu0 %v269
        %1469 = vmatprep.subr.bf16.mxu0 0
        %1470 = vmatpush2.bf16.msra.mxu0 %v268
        %1471 = vmatprep.subr.bf16.mxu0 0
        %1472 = vmatpush2.bf16.msra.mxu0 %v267
        %1473 = vmatprep.subr.bf16.mxu0 0
        %1474 = vmatpush2.bf16.msra.mxu0 %v266
        %1475 = vmatprep.subr.bf16.mxu0 0
        %1476 = vmatpush2.bf16.msra.mxu0 %v265
        %1477 = vmatprep.subr.bf16.mxu0 0
        %1478 = vmatpush2.bf16.msra.mxu0 %v264
        %1479 = vmatprep.subr.bf16.mxu0 0
        %1480 = vmatpush2.bf16.msra.mxu0 %v263
        %1481 = vmatprep.mubr.bf16.mxu0 %v1434
        %1482 = vmatmul.mubr.bf16.gmra.mxu0 %v1433
        %v1483 = vpop.f32.mrf.mxu0
        %v1484 = vadd.f32 0.0, %v1483
        %v1485 = vpop.f32.mrf.mxu0
        %v1486 = vpop.f32.mrf.mxu0
        %v1487 = vadd.f32 0.0, %v1486
        %v1488 = vpop.f32.mrf.mxu0
        %1489 = vmatprep.mubr.bf16.mxu0 %v1436
        %1490 = vmatmul.mubr.bf16.gmra.mxu0 %v1435
        %v1491 = vpop.f32.mrf.mxu0
        %v1492 = vadd.f32 0.0, %v1491
        %v1493 = vpop.f32.mrf.mxu0
        %v1494 = vpop.f32.mrf.mxu0
        %v1495 = vadd.f32 0.0, %v1494
        %v1496 = vpop.f32.mrf.mxu0
        %1497 = vmatprep.mubr.bf16.mxu0 %v1438
        %1498 = vmatmul.mubr.bf16.gmra.mxu0 %v1437
        %v1499 = vpop.f32.mrf.mxu0
        %v1500 = vadd.f32 0.0, %v1499
        %v1501 = vpop.f32.mrf.mxu0
        %v1502 = vpop.f32.mrf.mxu0
        %v1503 = vadd.f32 0.0, %v1502
        %v1504 = vpop.f32.mrf.mxu0
        %1505 = vmatprep.mubr.bf16.mxu0 %v1440
        %1506 = vmatmul.mubr.bf16.gmra.mxu0 %v1439
        %v1507 = vpop.f32.mrf.mxu0
        %v1508 = vadd.f32 0.0, %v1507
        %v1509 = vpop.f32.mrf.mxu0
        %v1510 = vpop.f32.mrf.mxu0
        %v1511 = vadd.f32 0.0, %v1510
        %v1512 = vpop.f32.mrf.mxu0
        %1513 = vmatprep.mubr.bf16.mxu0 %v1442
        %1514 = vmatmul.mubr.bf16.gmra.mxu0 %v1441
        %v1515 = vpop.f32.mrf.mxu0
        %v1516 = vadd.f32 0.0, %v1515
        %v1517 = vpop.f32.mrf.mxu0
        %v1518 = vpop.f32.mrf.mxu0
        %v1519 = vadd.f32 0.0, %v1518
        %v1520 = vpop.f32.mrf.mxu0
        %1521 = vmatprep.mubr.bf16.mxu0 %v1444
        %1522 = vmatmul.mubr.bf16.gmra.mxu0 %v1443
        %v1523 = vpop.f32.mrf.mxu0
        %v1524 = vadd.f32 0.0, %v1523
        %v1525 = vpop.f32.mrf.mxu0
        %v1526 = vpop.f32.mrf.mxu0
        %v1527 = vadd.f32 0.0, %v1526
        %v1528 = vpop.f32.mrf.mxu0
        %1529 = vmatprep.mubr.bf16.mxu0 %v1446
        %1530 = vmatmul.mubr.bf16.gmra.mxu0 %v1445
        %v1531 = vpop.f32.mrf.mxu0
        %v1532 = vadd.f32 0.0, %v1531
        %v1533 = vpop.f32.mrf.mxu0
        %v1534 = vpop.f32.mrf.mxu0
        %v1535 = vadd.f32 0.0, %v1534
        %v1536 = vpop.f32.mrf.mxu0
        %1537 = vmatprep.mubr.bf16.mxu0 %v1448
        %1538 = vmatmul.mubr.bf16.gmra.mxu0 %v1447
        %v1539 = vpop.f32.mrf.mxu0
        %v1540 = vadd.f32 0.0, %v1539
        %v1541 = vpop.f32.mrf.mxu0
        %v1542 = vpop.f32.mrf.mxu0
        %v1543 = vadd.f32 0.0, %v1542
        %v1544 = vpop.f32.mrf.mxu0
        %1545 = vdwg.mxu0
        %v1546 = vrcp.pop %v1387
        %v1547 = vrcp.pop %v1390
        %v1548 = vrcp.pop %v1393
        %v1549 = vrcp.pop %v1396
        %v1550 = vrcp.pop %v1399
        %v1551 = vrcp.pop %v1402
        %v1552 = vrcp.pop %v1405
        %v1553 = vrcp.pop %v1408
        %v1554 = vrcp.pop %v1411
        %v1555 = vrcp.pop %v1414
        %v1556 = vrcp.pop %v1417
        %v1557 = vrcp.pop %v1420
        %v1558 = vrcp.pop %v1423
        %v1559 = vrcp.pop %v1426
        %v1560 = vrcp.pop %v1429
        %v1561 = vrcp.pop %v1432
        %v1562 = vmul.f32 %v1484, %v1546
        %v1563 = vmul.f32 %v1487, %v1547
        %v1564 = vmul.f32 %v1492, %v1548
        %v1565 = vmul.f32 %v1495, %v1549
        %v1566 = vmul.f32 %v1500, %v1550
        %v1567 = vmul.f32 %v1503, %v1551
        %v1568 = vmul.f32 %v1508, %v1552
        %v1569 = vmul.f32 %v1511, %v1553
        %v1570 = vmul.f32 %v1516, %v1554
        %v1571 = vmul.f32 %v1519, %v1555
        %v1572 = vmul.f32 %v1524, %v1556
        %v1573 = vmul.f32 %v1527, %v1557
        %v1574 = vmul.f32 %v1532, %v1558
        %v1575 = vmul.f32 %v1535, %v1559
        %v1576 = vmul.f32 %v1540, %v1560
        %v1577 = vmul.f32 %v1543, %v1561
        %s1578 = scalar_lea.vmem %s219, 128
        %1579 = vst.msk [vmem:[%s1578] sm:$0xff] %vm735, %v1562
        %1580 = vst.msk [vmem:[%s1578 + $0x8] sm:$0xff] %vm735, %v1563
        %1581 = vst.msk [vmem:[%s1578 + $0x10] sm:$0xff] %vm735, %v1564
        %1582 = vst.msk [vmem:[%s1578 + $0x18] sm:$0xff] %vm735, %v1565
        %1583 = vst.msk [vmem:[%s1578 + $0x20] sm:$0xff] %vm735, %v1566
        %1584 = vst.msk [vmem:[%s1578 + $0x28] sm:$0xff] %vm735, %v1567
        %1585 = vst.msk [vmem:[%s1578 + $0x30] sm:$0xff] %vm735, %v1568
        %1586 = vst.msk [vmem:[%s1578 + $0x38] sm:$0xff] %vm735, %v1569
        %1587 = vst.msk [vmem:[%s1578 + $0x40] sm:$0xff] %vm735, %v1570
        %1588 = vst.msk [vmem:[%s1578 + $0x48] sm:$0xff] %vm735, %v1571
        %1589 = vst.msk [vmem:[%s1578 + $0x50] sm:$0xff] %vm735, %v1572
        %1590 = vst.msk [vmem:[%s1578 + $0x58] sm:$0xff] %vm735, %v1573
        %1591 = vst.msk [vmem:[%s1578 + $0x60] sm:$0xff] %vm735, %v1574
        %1592 = vst.msk [vmem:[%s1578 + $0x68] sm:$0xff] %vm735, %v1575
        %1593 = vst.msk [vmem:[%s1578 + $0x70] sm:$0xff] %vm735, %v1576
        %1594 = vst.msk [vmem:[%s1578 + $0x78] sm:$0xff] %vm735, %v1577
        %s1595 = sadd.s32 %s1174, 64
        %s1596 = smul.addr %s1595, 8
        %s1597 = scalar_lea.vmem %s176, %s1596 [#allocation2]
        %v1598 = vld [vmem:[%s1597] sm:$0xff]
        %v1599 = vld [vmem:[%s1597 + $0x8] sm:$0xff]
        %v1600 = vld [vmem:[%s1597 + $0x10] sm:$0xff]
        %v1601 = vld [vmem:[%s1597 + $0x18] sm:$0xff]
        %v1602 = vld [vmem:[%s1597 + $0x20] sm:$0xff]
        %v1603 = vld [vmem:[%s1597 + $0x28] sm:$0xff]
        %v1604 = vld [vmem:[%s1597 + $0x30] sm:$0xff]
        %v1605 = vld [vmem:[%s1597 + $0x38] sm:$0xff]
        %v1606 = vld [vmem:[%s1597 + $0x40] sm:$0xff]
        %v1607 = vld [vmem:[%s1597 + $0x48] sm:$0xff]
        %v1608 = vld [vmem:[%s1597 + $0x50] sm:$0xff]
        %v1609 = vld [vmem:[%s1597 + $0x58] sm:$0xff]
        %v1610 = vld [vmem:[%s1597 + $0x60] sm:$0xff]
        %v1611 = vld [vmem:[%s1597 + $0x68] sm:$0xff]
        %v1612 = vld [vmem:[%s1597 + $0x70] sm:$0xff]
        %v1613 = vld [vmem:[%s1597 + $0x78] sm:$0xff]
        %v1614 = vld [vmem:[%s1597 + $0x80] sm:$0xff]
        %v1615 = vld [vmem:[%s1597 + $0x88] sm:$0xff]
        %v1616 = vld [vmem:[%s1597 + $0x90] sm:$0xff]
        %v1617 = vld [vmem:[%s1597 + $0x98] sm:$0xff]
        %v1618 = vld [vmem:[%s1597 + $0xa0] sm:$0xff]
        %v1619 = vld [vmem:[%s1597 + $0xa8] sm:$0xff]
        %v1620 = vld [vmem:[%s1597 + $0xb0] sm:$0xff]
        %v1621 = vld [vmem:[%s1597 + $0xb8] sm:$0xff]
        %v1622 = vld [vmem:[%s1597 + $0xc0] sm:$0xff]
        %v1623 = vld [vmem:[%s1597 + $0xc8] sm:$0xff]
        %v1624 = vld [vmem:[%s1597 + $0xd0] sm:$0xff]
        %v1625 = vld [vmem:[%s1597 + $0xd8] sm:$0xff]
        %v1626 = vld [vmem:[%s1597 + $0xe0] sm:$0xff]
        %v1627 = vld [vmem:[%s1597 + $0xe8] sm:$0xff]
        %v1628 = vld [vmem:[%s1597 + $0xf0] sm:$0xff]
        %v1629 = vld [vmem:[%s1597 + $0xf8] sm:$0xff]
        %v1630 = vadd.f32 %v1598, %v359
        %v1631 = vadd.f32 %v1599, %v363
        %v1632 = vadd.f32 %v1600, %v359
        %v1633 = vadd.f32 %v1601, %v363
        %v1634 = vadd.f32 %v1602, %v359
        %v1635 = vadd.f32 %v1603, %v363
        %v1636 = vadd.f32 %v1604, %v359
        %v1637 = vadd.f32 %v1605, %v363
        %v1638 = vadd.f32 %v1606, %v359
        %v1639 = vadd.f32 %v1607, %v363
        %v1640 = vadd.f32 %v1608, %v359
        %v1641 = vadd.f32 %v1609, %v363
        %v1642 = vadd.f32 %v1610, %v359
        %v1643 = vadd.f32 %v1611, %v363
        %v1644 = vadd.f32 %v1612, %v359
        %v1645 = vadd.f32 %v1613, %v363
        %v1646 = vadd.f32 %v1614, %v359
        %v1647 = vadd.f32 %v1615, %v363
        %v1648 = vadd.f32 %v1616, %v359
        %v1649 = vadd.f32 %v1617, %v363
        %v1650 = vadd.f32 %v1618, %v359
        %v1651 = vadd.f32 %v1619, %v363
        %v1652 = vadd.f32 %v1620, %v359
        %v1653 = vadd.f32 %v1621, %v363
        %v1654 = vadd.f32 %v1622, %v359
        %v1655 = vadd.f32 %v1623, %v363
        %v1656 = vadd.f32 %v1624, %v359
        %v1657 = vadd.f32 %v1625, %v363
        %v1658 = vadd.f32 %v1626, %v359
        %v1659 = vadd.f32 %v1627, %v363
        %v1660 = vadd.f32 %v1628, %v359
        %v1661 = vadd.f32 %v1629, %v363
        %v1662 = vmax.f32 %v1630, %v1631
        %1663 = vmax.xlane.f32.xlu0 %v1662
        %v1664 = vpop.xlane.xlu0 %1663
        %v1665 = vmax.f32 %v1632, %v1633
        %1666 = vmax.xlane.f32.xlu0 %v1665
        %v1667 = vpop.xlane.xlu0 %1666
        %v1668 = vmax.f32 %v1634, %v1635
        %1669 = vmax.xlane.f32.xlu0 %v1668
        %v1670 = vpop.xlane.xlu0 %1669
        %v1671 = vmax.f32 %v1636, %v1637
        %1672 = vmax.xlane.f32.xlu0 %v1671
        %v1673 = vpop.xlane.xlu0 %1672
        %v1674 = vmax.f32 %v1638, %v1639
        %1675 = vmax.xlane.f32.xlu0 %v1674
        %v1676 = vpop.xlane.xlu0 %1675
        %v1677 = vmax.f32 %v1640, %v1641
        %1678 = vmax.xlane.f32.xlu0 %v1677
        %v1679 = vpop.xlane.xlu0 %1678
        %v1680 = vmax.f32 %v1642, %v1643
        %1681 = vmax.xlane.f32.xlu0 %v1680
        %v1682 = vpop.xlane.xlu0 %1681
        %v1683 = vmax.f32 %v1644, %v1645
        %1684 = vmax.xlane.f32.xlu0 %v1683
        %v1685 = vpop.xlane.xlu0 %1684
        %v1686 = vmax.f32 %v1646, %v1647
        %1687 = vmax.xlane.f32.xlu0 %v1686
        %v1688 = vpop.xlane.xlu0 %1687
        %v1689 = vmax.f32 %v1648, %v1649
        %1690 = vmax.xlane.f32.xlu0 %v1689
        %v1691 = vpop.xlane.xlu0 %1690
        %v1692 = vmax.f32 %v1650, %v1651
        %1693 = vmax.xlane.f32.xlu0 %v1692
        %v1694 = vpop.xlane.xlu0 %1693
        %v1695 = vmax.f32 %v1652, %v1653
        %1696 = vmax.xlane.f32.xlu0 %v1695
        %v1697 = vpop.xlane.xlu0 %1696
        %v1698 = vmax.f32 %v1654, %v1655
        %1699 = vmax.xlane.f32.xlu0 %v1698
        %v1700 = vpop.xlane.xlu0 %1699
        %v1701 = vmax.f32 %v1656, %v1657
        %1702 = vmax.xlane.f32.xlu0 %v1701
        %v1703 = vpop.xlane.xlu0 %1702
        %v1704 = vmax.f32 %v1658, %v1659
        %1705 = vmax.xlane.f32.xlu0 %v1704
        %v1706 = vpop.xlane.xlu0 %1705
        %v1707 = vmax.f32 %v1660, %v1661
        %1708 = vmax.xlane.f32.xlu0 %v1707
        %v1709 = vpop.xlane.xlu0 %1708
        %v1710 = vsub.f32 %v1630, %v1664
        %v1711 = vsub.f32 %v1631, %v1664
        %v1712 = vsub.f32 %v1632, %v1667
        %v1713 = vsub.f32 %v1633, %v1667
        %v1714 = vsub.f32 %v1634, %v1670
        %v1715 = vsub.f32 %v1635, %v1670
        %v1716 = vsub.f32 %v1636, %v1673
        %v1717 = vsub.f32 %v1637, %v1673
        %v1718 = vsub.f32 %v1638, %v1676
        %v1719 = vsub.f32 %v1639, %v1676
        %v1720 = vsub.f32 %v1640, %v1679
        %v1721 = vsub.f32 %v1641, %v1679
        %v1722 = vsub.f32 %v1642, %v1682
        %v1723 = vsub.f32 %v1643, %v1682
        %v1724 = vsub.f32 %v1644, %v1685
        %v1725 = vsub.f32 %v1645, %v1685
        %v1726 = vsub.f32 %v1646, %v1688
        %v1727 = vsub.f32 %v1647, %v1688
        %v1728 = vsub.f32 %v1648, %v1691
        %v1729 = vsub.f32 %v1649, %v1691
        %v1730 = vsub.f32 %v1650, %v1694
        %v1731 = vsub.f32 %v1651, %v1694
        %v1732 = vsub.f32 %v1652, %v1697
        %v1733 = vsub.f32 %v1653, %v1697
        %v1734 = vsub.f32 %v1654, %v1700
        %v1735 = vsub.f32 %v1655, %v1700
        %v1736 = vsub.f32 %v1656, %v1703
        %v1737 = vsub.f32 %v1657, %v1703
        %v1738 = vsub.f32 %v1658, %v1706
        %v1739 = vsub.f32 %v1659, %v1706
        %v1740 = vsub.f32 %v1660, %v1709
        %v1741 = vsub.f32 %v1661, %v1709
        %v1742 = vmul.f32 %v1710, 1.442695
        %v1743 = vpow.pop %v1742
        %v1744 = vmul.f32 %v1711, 1.442695
        %v1745 = vpow.pop %v1744
        %v1746 = vmul.f32 %v1712, 1.442695
        %v1747 = vpow.pop %v1746
        %v1748 = vmul.f32 %v1713, 1.442695
        %v1749 = vpow.pop %v1748
        %v1750 = vmul.f32 %v1714, 1.442695
        %v1751 = vpow.pop %v1750
        %v1752 = vmul.f32 %v1715, 1.442695
        %v1753 = vpow.pop %v1752
        %v1754 = vmul.f32 %v1716, 1.442695
        %v1755 = vpow.pop %v1754
        %v1756 = vmul.f32 %v1717, 1.442695
        %v1757 = vpow.pop %v1756
        %v1758 = vmul.f32 %v1718, 1.442695
        %v1759 = vpow.pop %v1758
        %v1760 = vmul.f32 %v1719, 1.442695
        %v1761 = vpow.pop %v1760
        %v1762 = vmul.f32 %v1720, 1.442695
        %v1763 = vpow.pop %v1762
        %v1764 = vmul.f32 %v1721, 1.442695
        %v1765 = vpow.pop %v1764
        %v1766 = vmul.f32 %v1722, 1.442695
        %v1767 = vpow.pop %v1766
        %v1768 = vmul.f32 %v1723, 1.442695
        %v1769 = vpow.pop %v1768
        %v1770 = vmul.f32 %v1724, 1.442695
        %v1771 = vpow.pop %v1770
        %v1772 = vmul.f32 %v1725, 1.442695
        %v1773 = vpow.pop %v1772
        %v1774 = vmul.f32 %v1726, 1.442695
        %v1775 = vpow.pop %v1774
        %v1776 = vmul.f32 %v1727, 1.442695
        %v1777 = vpow.pop %v1776
        %v1778 = vmul.f32 %v1728, 1.442695
        %v1779 = vpow.pop %v1778
        %v1780 = vmul.f32 %v1729, 1.442695
        %v1781 = vpow.pop %v1780
        %v1782 = vmul.f32 %v1730, 1.442695
        %v1783 = vpow.pop %v1782
        %v1784 = vmul.f32 %v1731, 1.442695
        %v1785 = vpow.pop %v1784
        %v1786 = vmul.f32 %v1732, 1.442695
        %v1787 = vpow.pop %v1786
        %v1788 = vmul.f32 %v1733, 1.442695
        %v1789 = vpow.pop %v1788
        %v1790 = vmul.f32 %v1734, 1.442695
        %v1791 = vpow.pop %v1790
        %v1792 = vmul.f32 %v1735, 1.442695
        %v1793 = vpow.pop %v1792
        %v1794 = vmul.f32 %v1736, 1.442695
        %v1795 = vpow.pop %v1794
        %v1796 = vmul.f32 %v1737, 1.442695
        %v1797 = vpow.pop %v1796
        %v1798 = vmul.f32 %v1738, 1.442695
        %v1799 = vpow.pop %v1798
        %v1800 = vmul.f32 %v1739, 1.442695
        %v1801 = vpow.pop %v1800
        %v1802 = vmul.f32 %v1740, 1.442695
        %v1803 = vpow.pop %v1802
        %v1804 = vmul.f32 %v1741, 1.442695
        %v1805 = vpow.pop %v1804
        %v1806 = vadd.f32 %v1743, %v1745
        %1807 = vadd.xlane.f32.xlu0 %v1806
        %v1808 = vpop.xlane.xlu0 %1807
        %v1809 = vadd.f32 %v1747, %v1749
        %1810 = vadd.xlane.f32.xlu0 %v1809
        %v1811 = vpop.xlane.xlu0 %1810
        %v1812 = vadd.f32 %v1751, %v1753
        %1813 = vadd.xlane.f32.xlu0 %v1812
        %v1814 = vpop.xlane.xlu0 %1813
        %v1815 = vadd.f32 %v1755, %v1757
        %1816 = vadd.xlane.f32.xlu0 %v1815
        %v1817 = vpop.xlane.xlu0 %1816
        %v1818 = vadd.f32 %v1759, %v1761
        %1819 = vadd.xlane.f32.xlu0 %v1818
        %v1820 = vpop.xlane.xlu0 %1819
        %v1821 = vadd.f32 %v1763, %v1765
        %1822 = vadd.xlane.f32.xlu0 %v1821
        %v1823 = vpop.xlane.xlu0 %1822
        %v1824 = vadd.f32 %v1767, %v1769
        %1825 = vadd.xlane.f32.xlu0 %v1824
        %v1826 = vpop.xlane.xlu0 %1825
        %v1827 = vadd.f32 %v1771, %v1773
        %1828 = vadd.xlane.f32.xlu0 %v1827
        %v1829 = vpop.xlane.xlu0 %1828
        %v1830 = vadd.f32 %v1775, %v1777
        %1831 = vadd.xlane.f32.xlu0 %v1830
        %v1832 = vpop.xlane.xlu0 %1831
        %v1833 = vadd.f32 %v1779, %v1781
        %1834 = vadd.xlane.f32.xlu0 %v1833
        %v1835 = vpop.xlane.xlu0 %1834
        %v1836 = vadd.f32 %v1783, %v1785
        %1837 = vadd.xlane.f32.xlu0 %v1836
        %v1838 = vpop.xlane.xlu0 %1837
        %v1839 = vadd.f32 %v1787, %v1789
        %1840 = vadd.xlane.f32.xlu0 %v1839
        %v1841 = vpop.xlane.xlu0 %1840
        %v1842 = vadd.f32 %v1791, %v1793
        %1843 = vadd.xlane.f32.xlu0 %v1842
        %v1844 = vpop.xlane.xlu0 %1843
        %v1845 = vadd.f32 %v1795, %v1797
        %1846 = vadd.xlane.f32.xlu0 %v1845
        %v1847 = vpop.xlane.xlu0 %1846
        %v1848 = vadd.f32 %v1799, %v1801
        %1849 = vadd.xlane.f32.xlu0 %v1848
        %v1850 = vpop.xlane.xlu0 %1849
        %v1851 = vadd.f32 %v1803, %v1805
        %1852 = vadd.xlane.f32.xlu0 %v1851
        %v1853 = vpop.xlane.xlu0 %1852
        %v1854 = vpack.c.bf16 %v1747, %v1743
        %v1855 = vpack.c.bf16 %v1749, %v1745
        %v1856 = vpack.c.bf16 %v1755, %v1751
        %v1857 = vpack.c.bf16 %v1757, %v1753
        %v1858 = vpack.c.bf16 %v1763, %v1759
        %v1859 = vpack.c.bf16 %v1765, %v1761
        %v1860 = vpack.c.bf16 %v1771, %v1767
        %v1861 = vpack.c.bf16 %v1773, %v1769
        %v1862 = vpack.c.bf16 %v1779, %v1775
        %v1863 = vpack.c.bf16 %v1781, %v1777
        %v1864 = vpack.c.bf16 %v1787, %v1783
        %v1865 = vpack.c.bf16 %v1789, %v1785
        %v1866 = vpack.c.bf16 %v1795, %v1791
        %v1867 = vpack.c.bf16 %v1797, %v1793
        %v1868 = vpack.c.bf16 %v1803, %v1799
        %v1869 = vpack.c.bf16 %v1805, %v1801
        %1870 = vmatprep.subr.bf16.mxu0 0
        %1871 = vmatpush1.bf16.msra.mxu0 %v311
        %1872 = vmatprep.subr.bf16.mxu0 0
        %1873 = vmatpush1.bf16.msra.mxu0 %v310
        %1874 = vmatprep.subr.bf16.mxu0 0
        %1875 = vmatpush1.bf16.msra.mxu0 %v309
        %1876 = vmatprep.subr.bf16.mxu0 0
        %1877 = vmatpush1.bf16.msra.mxu0 %v308
        %1878 = vmatprep.subr.bf16.mxu0 0
        %1879 = vmatpush1.bf16.msra.mxu0 %v307
        %1880 = vmatprep.subr.bf16.mxu0 0
        %1881 = vmatpush1.bf16.msra.mxu0 %v306
        %1882 = vmatprep.subr.bf16.mxu0 0
        %1883 = vmatpush1.bf16.msra.mxu0 %v305
        %1884 = vmatprep.subr.bf16.mxu0 0
        %1885 = vmatpush1.bf16.msra.mxu0 %v304
        %1886 = vmatprep.subr.bf16.mxu0 0
        %1887 = vmatpush2.bf16.msra.mxu0 %v319
        %1888 = vmatprep.subr.bf16.mxu0 0
        %1889 = vmatpush2.bf16.msra.mxu0 %v318
        %1890 = vmatprep.subr.bf16.mxu0 0
        %1891 = vmatpush2.bf16.msra.mxu0 %v317
        %1892 = vmatprep.subr.bf16.mxu0 0
        %1893 = vmatpush2.bf16.msra.mxu0 %v316
        %1894 = vmatprep.subr.bf16.mxu0 0
        %1895 = vmatpush2.bf16.msra.mxu0 %v315
        %1896 = vmatprep.subr.bf16.mxu0 0
        %1897 = vmatpush2.bf16.msra.mxu0 %v314
        %1898 = vmatprep.subr.bf16.mxu0 0
        %1899 = vmatpush2.bf16.msra.mxu0 %v313
        %1900 = vmatprep.subr.bf16.mxu0 0
        %1901 = vmatpush2.bf16.msra.mxu0 %v312
        %1902 = vmatprep.mubr.bf16.mxu0 %v1855
        %1903 = vmatmul.mubr.bf16.gmra.mxu0 %v1854
        %v1904 = vpop.f32.mrf.mxu0
        %v1905 = vadd.f32 0.0, %v1904
        %v1906 = vpop.f32.mrf.mxu0
        %v1907 = vpop.f32.mrf.mxu0
        %v1908 = vadd.f32 0.0, %v1907
        %v1909 = vpop.f32.mrf.mxu0
        %1910 = vmatprep.mubr.bf16.mxu0 %v1857
        %1911 = vmatmul.mubr.bf16.gmra.mxu0 %v1856
        %v1912 = vpop.f32.mrf.mxu0
        %v1913 = vadd.f32 0.0, %v1912
        %v1914 = vpop.f32.mrf.mxu0
        %v1915 = vpop.f32.mrf.mxu0
        %v1916 = vadd.f32 0.0, %v1915
        %v1917 = vpop.f32.mrf.mxu0
        %1918 = vmatprep.mubr.bf16.mxu0 %v1859
        %1919 = vmatmul.mubr.bf16.gmra.mxu0 %v1858
        %v1920 = vpop.f32.mrf.mxu0
        %v1921 = vadd.f32 0.0, %v1920
        %v1922 = vpop.f32.mrf.mxu0
        %v1923 = vpop.f32.mrf.mxu0
        %v1924 = vadd.f32 0.0, %v1923
        %v1925 = vpop.f32.mrf.mxu0
        %1926 = vmatprep.mubr.bf16.mxu0 %v1861
        %1927 = vmatmul.mubr.bf16.gmra.mxu0 %v1860
        %v1928 = vpop.f32.mrf.mxu0
        %v1929 = vadd.f32 0.0, %v1928
        %v1930 = vpop.f32.mrf.mxu0
        %v1931 = vpop.f32.mrf.mxu0
        %v1932 = vadd.f32 0.0, %v1931
        %v1933 = vpop.f32.mrf.mxu0
        %1934 = vmatprep.mubr.bf16.mxu0 %v1863
        %1935 = vmatmul.mubr.bf16.gmra.mxu0 %v1862
        %v1936 = vpop.f32.mrf.mxu0
        %v1937 = vadd.f32 0.0, %v1936
        %v1938 = vpop.f32.mrf.mxu0
        %v1939 = vpop.f32.mrf.mxu0
        %v1940 = vadd.f32 0.0, %v1939
        %v1941 = vpop.f32.mrf.mxu0
        %1942 = vmatprep.mubr.bf16.mxu0 %v1865
        %1943 = vmatmul.mubr.bf16.gmra.mxu0 %v1864
        %v1944 = vpop.f32.mrf.mxu0
        %v1945 = vadd.f32 0.0, %v1944
        %v1946 = vpop.f32.mrf.mxu0
        %v1947 = vpop.f32.mrf.mxu0
        %v1948 = vadd.f32 0.0, %v1947
        %v1949 = vpop.f32.mrf.mxu0
        %1950 = vmatprep.mubr.bf16.mxu0 %v1867
        %1951 = vmatmul.mubr.bf16.gmra.mxu0 %v1866
        %v1952 = vpop.f32.mrf.mxu0
        %v1953 = vadd.f32 0.0, %v1952
        %v1954 = vpop.f32.mrf.mxu0
        %v1955 = vpop.f32.mrf.mxu0
        %v1956 = vadd.f32 0.0, %v1955
        %v1957 = vpop.f32.mrf.mxu0
        %1958 = vmatprep.mubr.bf16.mxu0 %v1869
        %1959 = vmatmul.mubr.bf16.gmra.mxu0 %v1868
        %v1960 = vpop.f32.mrf.mxu0
        %v1961 = vadd.f32 0.0, %v1960
        %v1962 = vpop.f32.mrf.mxu0
        %v1963 = vpop.f32.mrf.mxu0
        %v1964 = vadd.f32 0.0, %v1963
        %v1965 = vpop.f32.mrf.mxu0
        %1966 = vdwg.mxu0
        %v1967 = vrcp.pop %v1808
        %v1968 = vrcp.pop %v1811
        %v1969 = vrcp.pop %v1814
        %v1970 = vrcp.pop %v1817
        %v1971 = vrcp.pop %v1820
        %v1972 = vrcp.pop %v1823
        %v1973 = vrcp.pop %v1826
        %v1974 = vrcp.pop %v1829
        %v1975 = vrcp.pop %v1832
        %v1976 = vrcp.pop %v1835
        %v1977 = vrcp.pop %v1838
        %v1978 = vrcp.pop %v1841
        %v1979 = vrcp.pop %v1844
        %v1980 = vrcp.pop %v1847
        %v1981 = vrcp.pop %v1850
        %v1982 = vrcp.pop %v1853
        %v1983 = vmul.f32 %v1905, %v1967
        %v1984 = vmul.f32 %v1908, %v1968
        %v1985 = vmul.f32 %v1913, %v1969
        %v1986 = vmul.f32 %v1916, %v1970
        %v1987 = vmul.f32 %v1921, %v1971
        %v1988 = vmul.f32 %v1924, %v1972
        %v1989 = vmul.f32 %v1929, %v1973
        %v1990 = vmul.f32 %v1932, %v1974
        %v1991 = vmul.f32 %v1937, %v1975
        %v1992 = vmul.f32 %v1940, %v1976
        %v1993 = vmul.f32 %v1945, %v1977
        %v1994 = vmul.f32 %v1948, %v1978
        %v1995 = vmul.f32 %v1953, %v1979
        %v1996 = vmul.f32 %v1956, %v1980
        %v1997 = vmul.f32 %v1961, %v1981
        %v1998 = vmul.f32 %v1964, %v1982
        %s1999 = sadd.s32 128, 256
        %s2000 = scalar_lea.vmem %s219, %s1999
        %2001 = vst.msk [vmem:[%s2000] sm:$0xff] %vm735, %v1983
        %2002 = vst.msk [vmem:[%s2000 + $0x8] sm:$0xff] %vm735, %v1984
        %2003 = vst.msk [vmem:[%s2000 + $0x10] sm:$0xff] %vm735, %v1985
        %2004 = vst.msk [vmem:[%s2000 + $0x18] sm:$0xff] %vm735, %v1986
        %2005 = vst.msk [vmem:[%s2000 + $0x20] sm:$0xff] %vm735, %v1987
        %2006 = vst.msk [vmem:[%s2000 + $0x28] sm:$0xff] %vm735, %v1988
        %2007 = vst.msk [vmem:[%s2000 + $0x30] sm:$0xff] %vm735, %v1989
        %2008 = vst.msk [vmem:[%s2000 + $0x38] sm:$0xff] %vm735, %v1990
        %2009 = vst.msk [vmem:[%s2000 + $0x40] sm:$0xff] %vm735, %v1991
        %2010 = vst.msk [vmem:[%s2000 + $0x48] sm:$0xff] %vm735, %v1992
        %2011 = vst.msk [vmem:[%s2000 + $0x50] sm:$0xff] %vm735, %v1993
        %2012 = vst.msk [vmem:[%s2000 + $0x58] sm:$0xff] %vm735, %v1994
        %2013 = vst.msk [vmem:[%s2000 + $0x60] sm:$0xff] %vm735, %v1995
        %2014 = vst.msk [vmem:[%s2000 + $0x68] sm:$0xff] %vm735, %v1996
        %2015 = vst.msk [vmem:[%s2000 + $0x70] sm:$0xff] %vm735, %v1997
        %2016 = vst.msk [vmem:[%s2000 + $0x78] sm:$0xff] %vm735, %v1998
        %s2017 = smul.u32 2, %s17
        %p2018 = scmp.lt.s32.totalorder %s2017, 3
        %s2019 = scalar_select %p2018, %s2017, 3
        %s2020 = smul.addr %s2019, 32
        %s2021 = smul.addr %s2020, 8
        %s2022 = scalar_lea.vmem %s3, %s2021
        // Predicated region
        $region37: #{tpu_custom_call.1} parent=31 // pred_check
          %p2023 = pneg %p108
        $region38: #{tpu_custom_call.1} parent=31 // pred_check_branch
          %2025 = sbr.rel (%p2023) target = $region40
        $region39: #{tpu_custom_call.1} parent=31 // pred_region
          %s2026 = smul.u32 2, %s17
        $region40: #{tpu_custom_call.1} parent=31 // pred_fallthru
          _
      $region32: #{tpu_custom_call.1} parent=5 // pred_fallthru
        _
      %p2027 = scmp.le.s32.totalorder 2, %s12
      // Predicated region
      $region41: #{tpu_custom_call.1} parent=5 // pred_check
        %p2028 = pneg %p2027
      $region42: #{tpu_custom_call.1} parent=5 // pred_check_branch
        %2030 = sbr.rel (%p2028) target = $region44
      $region43: #{tpu_custom_call.1} parent=5 // pred_region
        %s2031 = ssub.s32 %s12, 2
        // Predicated region
        $region45: #{tpu_custom_call.1} parent=43 // pred_check
          %p2032 = pneg %p114
        $region46: #{tpu_custom_call.1} parent=43 // pred_check_branch
          %2034 = sbr.rel (%p2032) target = $region48
        $region47: #{tpu_custom_call.1} parent=43 // pred_region
          %s2035 = smul.u32 2, %s18
          %p2036 = scmp.lt.s32.totalorder %s2035, 3
          %s2037 = scalar_select %p2036, %s2035, 3
          %s2038 = smul.addr %s2037, 32
          %s2039 = smul.addr %s2038, 8
          %s2040 = scalar_lea.vmem %s3, %s2039
        $region48: #{tpu_custom_call.1} parent=43 // pred_fallthru
          _
      $region44: #{tpu_custom_call.1} parent=5 // pred_fallthru
        _
    $region6: #{tpu_custom_call.1} parent=1 // loop_footer
      %s16 = sadd.s32 1, %s12
    $region7: #{tpu_custom_call.1} parent=1 // loop_footer_branch
      %11 = sbr.rel target = $region3
    $region8: #{tpu_custom_call.1} parent=1 // loop_exit
      _
    %2041 = vsyncpa [#allocation3], 1
    %s2042 = scalar_lea.sflag [#allocation3], 1
    %2043 = vsyncpa %s2042, 1

</llo_original>
